<compile_context>
chip_gen: v7x
topology: tpu7x:2x2x1
jax: 0.10.0
libtpu: 0.0.40
codegen_flags: <defaults>
</compile_context>

<pallas_src>
import functools

import jax
import jax.numpy as jnp
import numpy as np
from jax.experimental import pallas as pl
from jax.experimental.pallas import tpu as pltpu

EPS = 1e-5


# ----------------------------- in-kernel stage -------------------------------
def _stage(y, w2d, gamma, beta, mask, offsets, out_len, inv_count):
    """Fused valid 2x2 conv + BN(train stats) + ReLU on the (C, L) flat layout.

    y:      (cin, L_in) activations, L_in >= out_len + max(offsets)
    w2d:    (cout, 4*cin) weights, column index = tap*cin + channel
    gamma:  (cout, 1)   beta: (cout, 1)
    mask:   (1, out_len) 1.0 at valid conv-output lanes, 0.0 elsewhere
    returns (cout, out_len)
    """
    cin = y.shape[0]
    cout = w2d.shape[0]

    # Conv as 4*cin VPU outer-product mul+adds: channel counts are far too
    # small to amortize MXU fill/drain, so keep the MXU out of it entirely.
    acc = jnp.zeros((cout, out_len), jnp.float32)
    for t, off in enumerate(offsets):
        sh = y[:, off:off + out_len]                        # (cin, out_len)
        for c in range(cin):
            k = t * cin + c
            acc = acc + w2d[:, k:k + 1] * sh[c:c + 1, :]    # (cout,1)*(1,L) bcast

    # Train-mode batch stats over valid lanes only (two-pass variance).
    # Lane reductions run on the XLU; rsqrt on the EUP.
    mean = jnp.sum(acc * mask, axis=1, keepdims=True) * inv_count     # (cout,1)
    d = (acc - mean) * mask
    var = jnp.sum(d * d, axis=1, keepdims=True) * inv_count
    scale = gamma * jax.lax.rsqrt(var + EPS)
    shift = beta - mean * scale
    return jnp.maximum(acc * scale + shift, 0.0)


# ------------------------------ kernel builders -------------------------------
def _make_kernel_big(n, cin, cout, hw, l0, l1, l2, w, inv1, inv2):
    offs = (0, 1, w, w + 1)
    nhw = n * hw
    nk = 4 * cin

    def kernel(x_ref, wp_ref, m_ref, o_ref, xpad_ref):
        # In-kernel NCHW -> channel-major flat (C, N*H*W) "transpose" + zero pad
        # via per-image addressed stores into the VMEM scratch.
        for i in range(n):
            xpad_ref[:, i * hw:(i + 1) * hw] = x_ref[i]
        xpad_ref[:, nhw:] = jnp.zeros((cin, l0 - nhw), jnp.float32)
        x = xpad_ref[...]

        wp = wp_ref[...]                                   # (cin+cout, 4*cin+2)
        w1, g1, b1 = wp[:cin, :nk], wp[:cin, nk:nk + 1], wp[:cin, nk + 1:nk + 2]
        w2 = wp[cin:cin + cout, :nk]
        g2 = wp[cin:cin + cout, nk:nk + 1]
        b2 = wp[cin:cin + cout, nk + 1:nk + 2]
        m1 = m_ref[0:1, :]                                 # (1, l1)
        m2 = m_ref[1:2, :l2]                               # (1, l2)

        y1 = _stage(x, w1, g1, b1, m1, offs, l1, inv1)
        y2 = _stage(y1, w2, g2, b2, m2, offs, l2, inv2)

        # Lane-dense per-image stores; wrapper only reshapes + crops (no transpose).
        for i in range(n):
            o_ref[i] = y2[:, i * hw:(i + 1) * hw]

    return kernel


def _make_kernel_small(n, cin, hw, l0, l1, w, inv1):
    offs = (0, 1, w, w + 1)
    nhw = n * hw
    nk = 4 * cin

    def kernel(x_ref, wp_ref, m_ref, o_ref, xpad_ref):
        for i in range(n):
            xpad_ref[:, i * hw:(i + 1) * hw] = x_ref[i]
        xpad_ref[:, nhw:] = jnp.zeros((cin, l0 - nhw), jnp.float32)
        x = xpad_ref[...]
        wp = wp_ref[...]                                   # (cin, 4*cin+2)
        y1 = _stage(x, wp[:, :nk], wp[:, nk:nk + 1], wp[:, nk + 1:nk + 2],
                    m_ref[...], offs, l1, inv1)
        for i in range(n):
            o_ref[i] = y1[:, i * hw:(i + 1) * hw]

    return kernel


# -------------------------------- JAX glue ------------------------------------
def _round_up(v, m):
    return (v + m - 1) // m * m


def _pack_stage_params(w_oihw, gamma, beta):
    """PyTorch conv weight (Co,Ci,2,2) + BN gamma/beta -> (Co, 4*Ci+2) slab.
    Columns [0,4*Ci): w2d with column = tap*Ci + c (tap = dh*2+dw);
    column 4*Ci = gamma, column 4*Ci+1 = beta.
    Conv bias is dropped: it cancels exactly under train-mode BatchNorm."""
    co, ci, _, _ = w_oihw.shape
    w2d = jnp.transpose(w_oihw, (0, 2, 3, 1)).reshape(co, 4 * ci).astype(jnp.float32)
    return jnp.concatenate(
        [w2d,
         gamma.astype(jnp.float32).reshape(co, 1),
         beta.astype(jnp.float32).reshape(co, 1)], axis=1)


def _valid_mask(length, n, h, w, n_convs):
    """f32[length]: 1.0 at flat positions that are valid outputs after
    `n_convs` stacked valid 2x2 convs on the (unchanged) HxW flat grid."""
    idx = np.arange(length)
    h_i = (idx // w) % h
    w_i = idx % w
    ok = (idx < n * h * w) & (h_i <= h - 1 - n_convs) & (w_i <= w - 1 - n_convs)
    return ok.astype(np.float32)


@functools.partial(jax.jit, static_argnames="big")
def final_block_forward(x_nchw, params, big):
    """FinalBlock forward. Input NCHW (PyTorch convention), output NCHW."""
    n, cin, h, w = x_nchw.shape
    hw = h * w
    nhw = n * hw
    max_off = w + 1
    # Contiguous collapse of the last two dims: free (bitcast), no transpose here.
    x_r = x_nchw.reshape(n, cin, hw).astype(jnp.float32)

    vmem = pl.BlockSpec(memory_space=pltpu.MemorySpace.VMEM)
    p1 = _pack_stage_params(params["w1"], params["g1"], params["beta1"])

    if big:
        cout = params["w2"].shape[0]
        l2 = nhw                                # final compute width (lane-dense)
        l1 = _round_up(nhw + max_off, 128)      # stage-1 width (covers stage-2 taps)
        l0 = _round_up(l1 + max_off, 128)       # padded input width (VMEM scratch)
        wp = jnp.concatenate(
            [p1, _pack_stage_params(params["w2"], params["g2"], params["beta2"])],
            axis=0)                             # (cin+cout, 4*cin+2)
        m = np.zeros((2, l1), np.float32)       # lane-major masks, both stages packed
        m[0, :] = _valid_mask(l1, n, h, w, 1)
        m[1, :l2] = _valid_mask(l2, n, h, w, 2)
        inv1 = 1.0 / float(n * (h - 1) * (w - 1))
        inv2 = 1.0 / float(n * (h - 2) * (w - 2))
        out = pl.pallas_call(
            _make_kernel_big(n, cin, cout, hw, l0, l1, l2, w, inv1, inv2),
            out_shape=jax.ShapeDtypeStruct((n, cout, hw), jnp.float32),
            in_specs=[vmem, vmem, vmem],
            out_specs=vmem,
            scratch_shapes=[pltpu.VMEM((cin, l0), jnp.float32)],
        )(x_r, wp, jnp.asarray(m))
        return out.reshape(n, cout, h, w)[:, :, :h - 2, :w - 2]
    else:
        l1 = nhw
        l0 = _round_up(l1 + max_off, 128)
        m = _valid_mask(l1, n, h, w, 1).reshape(1, l1)
        inv1 = 1.0 / float(n * (h - 1) * (w - 1))
        out = pl.pallas_call(
            _make_kernel_small(n, cin, hw, l0, l1, w, inv1),
            out_shape=jax.ShapeDtypeStruct((n, cin, hw), jnp.float32),
            in_specs=[vmem, vmem, vmem],
            out_specs=vmem,
            scratch_shapes=[pltpu.VMEM((cin, l0), jnp.float32)],
        )(x_r, p1, jnp.asarray(m))
        return out.reshape(n, cin, h, w)[:, :, :h - 1, :w - 1]


# ---------------------------- pure-JAX reference -----------------------------
def _ref_conv2d(x_nhwc, w_oihw, b):
    w_hwio = jnp.transpose(w_oihw, (2, 3, 1, 0))
    y = jax.lax.conv_general_dilated(
        x_nhwc, w_hwio, window_strides=(1, 1), padding="VALID",
        dimension_numbers=("NHWC", "HWIO", "NHWC"))
    return y + b[None, None, None, :]


def _ref_bn_relu(y, gamma, beta):
    mean = jnp.mean(y, axis=(0, 1, 2), keepdims=True)
    var = jnp.mean((y - mean) ** 2, axis=(0, 1, 2), keepdims=True)
    z = (y - mean) * jax.lax.rsqrt(var + EPS) * gamma + beta
    return jnp.maximum(z, 0.0)


def final_block_reference(x_nchw, params, big):
    x = jnp.transpose(x_nchw, (0, 2, 3, 1)).astype(jnp.float32)
    y = _ref_bn_relu(_ref_conv2d(x, params["w1"], params["b1"]),
                     params["g1"], params["beta1"])
    if big:
        y = _ref_bn_relu(_ref_conv2d(y, params["w2"], params["b2"]),
                         params["g2"], params["beta2"])
    return jnp.transpose(y, (0, 3, 1, 2))


# --------------------------------- main ---------------------------------------
if __name__ == "__main__":
    N, CIN, COUT, H, W = 2, 4, 8, 16, 16

    key = jax.random.PRNGKey(0)
    kx, kw1, kb1, kg1, kbt1, kw2, kb2, kg2, kbt2 = jax.random.split(key, 9)

    x = jax.random.normal(kx, (N, CIN, H, W), dtype=jnp.float32)  # NCHW input

    params = {
        # conv1: Conv2d(cin, cin, kernel_size=2, bias=True)
        "w1": 0.1 * jax.random.normal(kw1, (CIN, CIN, 2, 2), dtype=jnp.float32),
        "b1": 0.1 * jax.random.normal(kb1, (CIN,), dtype=jnp.float32),
        # bn1: BatchNorm2d(cin)
        "g1": 1.0 + 0.1 * jax.random.normal(kg1, (CIN,), dtype=jnp.float32),
        "beta1": 0.1 * jax.random.normal(kbt1, (CIN,), dtype=jnp.float32),
        # conv2: Conv2d(cin, cout, kernel_size=2, bias=True)
        "w2": 0.1 * jax.random.normal(kw2, (COUT, CIN, 2, 2), dtype=jnp.float32),
        "b2": 0.1 * jax.random.normal(kb2, (COUT,), dtype=jnp.float32),
        # bn2: BatchNorm2d(cout)
        "g2": 1.0 + 0.1 * jax.random.normal(kg2, (COUT,), dtype=jnp.float32),
        "beta2": 0.1 * jax.random.normal(kbt2, (COUT,), dtype=jnp.float32),
    }

    # big=True path (conv->BN->ReLU twice)
    out = jax.block_until_ready(final_block_forward(x, params, big=True))
    ref = jax.block_until_ready(final_block_reference(x, params, True))
    assert out.shape == (N, COUT, H - 2, W - 2), out.shape
    np.testing.assert_allclose(np.asarray(out), np.asarray(ref), rtol=1e-5, atol=1e-5)

    # big=False path (single stage)
    out_s = jax.block_until_ready(final_block_forward(x, params, big=False))
    ref_s = jax.block_until_ready(final_block_reference(x, params, False))
    assert out_s.shape == (N, CIN, H - 1, W - 1), out_s.shape
    np.testing.assert_allclose(np.asarray(out_s), np.asarray(ref_s), rtol=1e-5, atol=1e-5)

    print("KERNEL_OK")
</pallas_src>

<mosaic_0001>
module attributes {stable_mosaic.version = 11 : i64} {
  func.func @kernel(%arg0: memref<2x4x256xf32, #tpu.memory_space<vmem>>, %arg1: memref<12x18xf32, #tpu.memory_space<vmem>>, %arg2: memref<2x640xf32, #tpu.memory_space<vmem>>, %arg3: memref<2x8x256xf32, #tpu.memory_space<vmem>>, %arg4: memref<4x768xf32, #tpu.memory_space<vmem>>) attributes {dimension_semantics = [], scalar_prefetch = 0 : i64, scratch_operands = 1 : i64, tpu.core_type = #tpu.core_type<tc>} {
    %c0 = arith.constant 0 : index
    %c0_0 = arith.constant 0 : index
    %c0_1 = arith.constant 0 : index
    %0 = vector.load %arg0[%c0, %c0_0, %c0_1] : memref<2x4x256xf32, #tpu.memory_space<vmem>>, vector<1x4x256xf32>
    %1 = vector.shape_cast %0 : vector<1x4x256xf32> to vector<4x256xf32>
    %c0_2 = arith.constant 0 : index
    %c0_3 = arith.constant 0 : index
    %2 = vector.load %arg4[%c0_2, %c0_3] : memref<4x768xf32, #tpu.memory_space<vmem>>, vector<4x256xf32>
    tpu.vector_store %arg4[%c0_2, %c0_3], %1 {strides = array<i32>} : memref<4x768xf32, #tpu.memory_space<vmem>>, vector<4x256xf32>,
    %c1 = arith.constant 1 : index
    %c0_4 = arith.constant 0 : index
    %c0_5 = arith.constant 0 : index
    %3 = vector.load %arg0[%c1, %c0_4, %c0_5] : memref<2x4x256xf32, #tpu.memory_space<vmem>>, vector<1x4x256xf32>
    %4 = vector.shape_cast %3 : vector<1x4x256xf32> to vector<4x256xf32>
    %c0_6 = arith.constant 0 : index
    %c256 = arith.constant 256 : index
    %5 = vector.load %arg4[%c0_6, %c256] : memref<4x768xf32, #tpu.memory_space<vmem>>, vector<4x256xf32>
    tpu.vector_store %arg4[%c0_6, %c256], %4 {strides = array<i32>} : memref<4x768xf32, #tpu.memory_space<vmem>>, vector<4x256xf32>,
    %cst = arith.constant 0.000000e+00 : f32
    %6 = vector.broadcast %cst : f32 to vector<4x256xf32>
    %c0_7 = arith.constant 0 : index
    %c512 = arith.constant 512 : index
    %7 = vector.load %arg4[%c0_7, %c512] : memref<4x768xf32, #tpu.memory_space<vmem>>, vector<4x256xf32>
    tpu.vector_store %arg4[%c0_7, %c512], %6 {strides = array<i32>} : memref<4x768xf32, #tpu.memory_space<vmem>>, vector<4x256xf32>,
    %c0_8 = arith.constant 0 : index
    %c0_9 = arith.constant 0 : index
    %8 = vector.load %arg4[%c0_8, %c0_9] : memref<4x768xf32, #tpu.memory_space<vmem>>, vector<4x768xf32>
    %c0_10 = arith.constant 0 : index
    %c0_11 = arith.constant 0 : index
    %9 = vector.load %arg1[%c0_10, %c0_11] : memref<12x18xf32, #tpu.memory_space<vmem>>, vector<12x18xf32>
    %10 = vector.extract_strided_slice %9 {offsets = [0, 0], sizes = [4, 16], strides = [1, 1]} : vector<12x18xf32> to vector<4x16xf32>
    %11 = vector.extract_strided_slice %9 {offsets = [0, 16], sizes = [4, 1], strides = [1, 1]} : vector<12x18xf32> to vector<4x1xf32>
    %12 = vector.extract_strided_slice %9 {offsets = [0, 17], sizes = [4, 1], strides = [1, 1]} : vector<12x18xf32> to vector<4x1xf32>
    %13 = vector.extract_strided_slice %9 {offsets = [4, 0], sizes = [8, 16], strides = [1, 1]} : vector<12x18xf32> to vector<8x16xf32>
    %14 = vector.extract_strided_slice %9 {offsets = [4, 16], sizes = [8, 1], strides = [1, 1]} : vector<12x18xf32> to vector<8x1xf32>
    %15 = vector.extract_strided_slice %9 {offsets = [4, 17], sizes = [8, 1], strides = [1, 1]} : vector<12x18xf32> to vector<8x1xf32>
    %c0_12 = arith.constant 0 : index
    %c0_13 = arith.constant 0 : index
    %16 = vector.load %arg2[%c0_12, %c0_13] : memref<2x640xf32, #tpu.memory_space<vmem>>, vector<1x640xf32>
    %c1_14 = arith.constant 1 : index
    %c0_15 = arith.constant 0 : index
    %17 = vector.load %arg2[%c1_14, %c0_15] : memref<2x640xf32, #tpu.memory_space<vmem>>, vector<1x512xf32>
    %cst_16 = arith.constant 0.000000e+00 : f32
    %18 = vector.broadcast %cst_16 : f32 to vector<4x640xf32>
    %19 = vector.extract_strided_slice %8 {offsets = [0, 0], sizes = [4, 640], strides = [1, 1]} : vector<4x768xf32> to vector<4x640xf32>
    %20 = vector.extract_strided_slice %10 {offsets = [0, 0], sizes = [4, 1], strides = [1, 1]} : vector<4x16xf32> to vector<4x1xf32>
    %21 = vector.extract_strided_slice %19 {offsets = [0, 0], sizes = [1, 640], strides = [1, 1]} : vector<4x640xf32> to vector<1x640xf32>
    %22 = vector.broadcast %20 : vector<4x1xf32> to vector<4x640xf32>
    %23 = vector.broadcast %21 : vector<1x640xf32> to vector<4x640xf32>
    %24 = arith.mulf %22, %23 : vector<4x640xf32>
    %25 = arith.addf %18, %24 : vector<4x640xf32>
    %26 = vector.extract_strided_slice %10 {offsets = [0, 1], sizes = [4, 1], strides = [1, 1]} : vector<4x16xf32> to vector<4x1xf32>
    %27 = vector.extract_strided_slice %19 {offsets = [1, 0], sizes = [1, 640], strides = [1, 1]} : vector<4x640xf32> to vector<1x640xf32>
    %28 = vector.broadcast %26 : vector<4x1xf32> to vector<4x640xf32>
    %29 = vector.broadcast %27 : vector<1x640xf32> to vector<4x640xf32>
    %30 = arith.mulf %28, %29 : vector<4x640xf32>
    %31 = arith.addf %25, %30 : vector<4x640xf32>
    %32 = vector.extract_strided_slice %10 {offsets = [0, 2], sizes = [4, 1], strides = [1, 1]} : vector<4x16xf32> to vector<4x1xf32>
    %33 = vector.extract_strided_slice %19 {offsets = [2, 0], sizes = [1, 640], strides = [1, 1]} : vector<4x640xf32> to vector<1x640xf32>
    %34 = vector.broadcast %32 : vector<4x1xf32> to vector<4x640xf32>
    %35 = vector.broadcast %33 : vector<1x640xf32> to vector<4x640xf32>
    %36 = arith.mulf %34, %35 : vector<4x640xf32>
    %37 = arith.addf %31, %36 : vector<4x640xf32>
    %38 = vector.extract_strided_slice %10 {offsets = [0, 3], sizes = [4, 1], strides = [1, 1]} : vector<4x16xf32> to vector<4x1xf32>
    %39 = vector.extract_strided_slice %19 {offsets = [3, 0], sizes = [1, 640], strides = [1, 1]} : vector<4x640xf32> to vector<1x640xf32>
    %40 = vector.broadcast %38 : vector<4x1xf32> to vector<4x640xf32>
    %41 = vector.broadcast %39 : vector<1x640xf32> to vector<4x640xf32>
    %42 = arith.mulf %40, %41 : vector<4x640xf32>
    %43 = arith.addf %37, %42 : vector<4x640xf32>
    %44 = vector.extract_strided_slice %8 {offsets = [0, 1], sizes = [4, 640], strides = [1, 1]} : vector<4x768xf32> to vector<4x640xf32>
    %45 = vector.extract_strided_slice %10 {offsets = [0, 4], sizes = [4, 1], strides = [1, 1]} : vector<4x16xf32> to vector<4x1xf32>
    %46 = vector.extract_strided_slice %44 {offsets = [0, 0], sizes = [1, 640], strides = [1, 1]} : vector<4x640xf32> to vector<1x640xf32>
    %47 = vector.broadcast %45 : vector<4x1xf32> to vector<4x640xf32>
    %48 = vector.broadcast %46 : vector<1x640xf32> to vector<4x640xf32>
    %49 = arith.mulf %47, %48 : vector<4x640xf32>
    %50 = arith.addf %43, %49 : vector<4x640xf32>
    %51 = vector.extract_strided_slice %10 {offsets = [0, 5], sizes = [4, 1], strides = [1, 1]} : vector<4x16xf32> to vector<4x1xf32>
    %52 = vector.extract_strided_slice %44 {offsets = [1, 0], sizes = [1, 640], strides = [1, 1]} : vector<4x640xf32> to vector<1x640xf32>
    %53 = vector.broadcast %51 : vector<4x1xf32> to vector<4x640xf32>
    %54 = vector.broadcast %52 : vector<1x640xf32> to vector<4x640xf32>
    %55 = arith.mulf %53, %54 : vector<4x640xf32>
    %56 = arith.addf %50, %55 : vector<4x640xf32>
    %57 = vector.extract_strided_slice %10 {offsets = [0, 6], sizes = [4, 1], strides = [1, 1]} : vector<4x16xf32> to vector<4x1xf32>
    %58 = vector.extract_strided_slice %44 {offsets = [2, 0], sizes = [1, 640], strides = [1, 1]} : vector<4x640xf32> to vector<1x640xf32>
    %59 = vector.broadcast %57 : vector<4x1xf32> to vector<4x640xf32>
    %60 = vector.broadcast %58 : vector<1x640xf32> to vector<4x640xf32>
    %61 = arith.mulf %59, %60 : vector<4x640xf32>
    %62 = arith.addf %56, %61 : vector<4x640xf32>
    %63 = vector.extract_strided_slice %10 {offsets = [0, 7], sizes = [4, 1], strides = [1, 1]} : vector<4x16xf32> to vector<4x1xf32>
    %64 = vector.extract_strided_slice %44 {offsets = [3, 0], sizes = [1, 640], strides = [1, 1]} : vector<4x640xf32> to vector<1x640xf32>
    %65 = vector.broadcast %63 : vector<4x1xf32> to vector<4x640xf32>
    %66 = vector.broadcast %64 : vector<1x640xf32> to vector<4x640xf32>
    %67 = arith.mulf %65, %66 : vector<4x640xf32>
    %68 = arith.addf %62, %67 : vector<4x640xf32>
    %69 = vector.extract_strided_slice %8 {offsets = [0, 16], sizes = [4, 640], strides = [1, 1]} : vector<4x768xf32> to vector<4x640xf32>
    %70 = vector.extract_strided_slice %10 {offsets = [0, 8], sizes = [4, 1], strides = [1, 1]} : vector<4x16xf32> to vector<4x1xf32>
    %71 = vector.extract_strided_slice %69 {offsets = [0, 0], sizes = [1, 640], strides = [1, 1]} : vector<4x640xf32> to vector<1x640xf32>
    %72 = vector.broadcast %70 : vector<4x1xf32> to vector<4x640xf32>
    %73 = vector.broadcast %71 : vector<1x640xf32> to vector<4x640xf32>
    %74 = arith.mulf %72, %73 : vector<4x640xf32>
    %75 = arith.addf %68, %74 : vector<4x640xf32>
    %76 = vector.extract_strided_slice %10 {offsets = [0, 9], sizes = [4, 1], strides = [1, 1]} : vector<4x16xf32> to vector<4x1xf32>
    %77 = vector.extract_strided_slice %69 {offsets = [1, 0], sizes = [1, 640], strides = [1, 1]} : vector<4x640xf32> to vector<1x640xf32>
    %78 = vector.broadcast %76 : vector<4x1xf32> to vector<4x640xf32>
    %79 = vector.broadcast %77 : vector<1x640xf32> to vector<4x640xf32>
    %80 = arith.mulf %78, %79 : vector<4x640xf32>
    %81 = arith.addf %75, %80 : vector<4x640xf32>
    %82 = vector.extract_strided_slice %10 {offsets = [0, 10], sizes = [4, 1], strides = [1, 1]} : vector<4x16xf32> to vector<4x1xf32>
    %83 = vector.extract_strided_slice %69 {offsets = [2, 0], sizes = [1, 640], strides = [1, 1]} : vector<4x640xf32> to vector<1x640xf32>
    %84 = vector.broadcast %82 : vector<4x1xf32> to vector<4x640xf32>
    %85 = vector.broadcast %83 : vector<1x640xf32> to vector<4x640xf32>
    %86 = arith.mulf %84, %85 : vector<4x640xf32>
    %87 = arith.addf %81, %86 : vector<4x640xf32>
    %88 = vector.extract_strided_slice %10 {offsets = [0, 11], sizes = [4, 1], strides = [1, 1]} : vector<4x16xf32> to vector<4x1xf32>
    %89 = vector.extract_strided_slice %69 {offsets = [3, 0], sizes = [1, 640], strides = [1, 1]} : vector<4x640xf32> to vector<1x640xf32>
    %90 = vector.broadcast %88 : vector<4x1xf32> to vector<4x640xf32>
    %91 = vector.broadcast %89 : vector<1x640xf32> to vector<4x640xf32>
    %92 = arith.mulf %90, %91 : vector<4x640xf32>
    %93 = arith.addf %87, %92 : vector<4x640xf32>
    %94 = vector.extract_strided_slice %8 {offsets = [0, 17], sizes = [4, 640], strides = [1, 1]} : vector<4x768xf32> to vector<4x640xf32>
    %95 = vector.extract_strided_slice %10 {offsets = [0, 12], sizes = [4, 1], strides = [1, 1]} : vector<4x16xf32> to vector<4x1xf32>
    %96 = vector.extract_strided_slice %94 {offsets = [0, 0], sizes = [1, 640], strides = [1, 1]} : vector<4x640xf32> to vector<1x640xf32>
    %97 = vector.broadcast %95 : vector<4x1xf32> to vector<4x640xf32>
    %98 = vector.broadcast %96 : vector<1x640xf32> to vector<4x640xf32>
    %99 = arith.mulf %97, %98 : vector<4x640xf32>
    %100 = arith.addf %93, %99 : vector<4x640xf32>
    %101 = vector.extract_strided_slice %10 {offsets = [0, 13], sizes = [4, 1], strides = [1, 1]} : vector<4x16xf32> to vector<4x1xf32>
    %102 = vector.extract_strided_slice %94 {offsets = [1, 0], sizes = [1, 640], strides = [1, 1]} : vector<4x640xf32> to vector<1x640xf32>
    %103 = vector.broadcast %101 : vector<4x1xf32> to vector<4x640xf32>
    %104 = vector.broadcast %102 : vector<1x640xf32> to vector<4x640xf32>
    %105 = arith.mulf %103, %104 : vector<4x640xf32>
    %106 = arith.addf %100, %105 : vector<4x640xf32>
    %107 = vector.extract_strided_slice %10 {offsets = [0, 14], sizes = [4, 1], strides = [1, 1]} : vector<4x16xf32> to vector<4x1xf32>
    %108 = vector.extract_strided_slice %94 {offsets = [2, 0], sizes = [1, 640], strides = [1, 1]} : vector<4x640xf32> to vector<1x640xf32>
    %109 = vector.broadcast %107 : vector<4x1xf32> to vector<4x640xf32>
    %110 = vector.broadcast %108 : vector<1x640xf32> to vector<4x640xf32>
    %111 = arith.mulf %109, %110 : vector<4x640xf32>
    %112 = arith.addf %106, %111 : vector<4x640xf32>
    %113 = vector.extract_strided_slice %10 {offsets = [0, 15], sizes = [4, 1], strides = [1, 1]} : vector<4x16xf32> to vector<4x1xf32>
    %114 = vector.extract_strided_slice %94 {offsets = [3, 0], sizes = [1, 640], strides = [1, 1]} : vector<4x640xf32> to vector<1x640xf32>
    %115 = vector.broadcast %113 : vector<4x1xf32> to vector<4x640xf32>
    %116 = vector.broadcast %114 : vector<1x640xf32> to vector<4x640xf32>
    %117 = arith.mulf %115, %116 : vector<4x640xf32>
    %118 = arith.addf %112, %117 : vector<4x640xf32>
    %119 = vector.broadcast %16 : vector<1x640xf32> to vector<4x640xf32>
    %120 = arith.mulf %118, %119 : vector<4x640xf32>
    %cst_17 = arith.constant dense<0.000000e+00> : vector<4xf32>
    %121 = vector.multi_reduction <add>, %120, %cst_17 [1] : vector<4x640xf32> to vector<4xf32>
    %122 = vector.shape_cast %121 : vector<4xf32> to vector<4x1xf32>
    %cst_18 = arith.constant 0.00222222228 : f32
    %123 = vector.broadcast %cst_18 : f32 to vector<4x1xf32>
    %124 = arith.mulf %122, %123 : vector<4x1xf32>
    %125 = vector.broadcast %124 : vector<4x1xf32> to vector<4x640xf32>
    %126 = arith.subf %118, %125 : vector<4x640xf32>
    %127 = vector.broadcast %16 : vector<1x640xf32> to vector<4x640xf32>
    %128 = arith.mulf %126, %127 : vector<4x640xf32>
    %129 = arith.mulf %128, %128 : vector<4x640xf32>
    %cst_19 = arith.constant dense<0.000000e+00> : vector<4xf32>
    %130 = vector.multi_reduction <add>, %129, %cst_19 [1] : vector<4x640xf32> to vector<4xf32>
    %131 = vector.shape_cast %130 : vector<4xf32> to vector<4x1xf32>
    %cst_20 = arith.constant 0.00222222228 : f32
    %132 = vector.broadcast %cst_20 : f32 to vector<4x1xf32>
    %133 = arith.mulf %131, %132 : vector<4x1xf32>
    %cst_21 = arith.constant 9.99999974E-6 : f32
    %134 = vector.broadcast %cst_21 : f32 to vector<4x1xf32>
    %135 = arith.addf %133, %134 : vector<4x1xf32>
    %136 = math.rsqrt %135 : vector<4x1xf32>
    %137 = arith.mulf %11, %136 : vector<4x1xf32>
    %138 = arith.mulf %124, %137 : vector<4x1xf32>
    %139 = arith.subf %12, %138 : vector<4x1xf32>
    %140 = vector.broadcast %137 : vector<4x1xf32> to vector<4x640xf32>
    %141 = arith.mulf %118, %140 : vector<4x640xf32>
    %142 = vector.broadcast %139 : vector<4x1xf32> to vector<4x640xf32>
    %143 = arith.addf %141, %142 : vector<4x640xf32>
    %cst_22 = arith.constant 0.000000e+00 : f32
    %144 = vector.broadcast %cst_22 : f32 to vector<4x640xf32>
    %145 = arith.maximumf %143, %144 : vector<4x640xf32>
    %cst_23 = arith.constant 0.000000e+00 : f32
    %146 = vector.broadcast %cst_23 : f32 to vector<8x512xf32>
    %147 = vector.extract_strided_slice %145 {offsets = [0, 0], sizes = [4, 512], strides = [1, 1]} : vector<4x640xf32> to vector<4x512xf32>
    %148 = vector.extract_strided_slice %13 {offsets = [0, 0], sizes = [8, 1], strides = [1, 1]} : vector<8x16xf32> to vector<8x1xf32>
    %149 = vector.extract_strided_slice %147 {offsets = [0, 0], sizes = [1, 512], strides = [1, 1]} : vector<4x512xf32> to vector<1x512xf32>
    %150 = vector.broadcast %148 : vector<8x1xf32> to vector<8x512xf32>
    %151 = vector.broadcast %149 : vector<1x512xf32> to vector<8x512xf32>
    %152 = arith.mulf %150, %151 : vector<8x512xf32>
    %153 = arith.addf %146, %152 : vector<8x512xf32>
    %154 = vector.extract_strided_slice %13 {offsets = [0, 1], sizes = [8, 1], strides = [1, 1]} : vector<8x16xf32> to vector<8x1xf32>
    %155 = vector.extract_strided_slice %147 {offsets = [1, 0], sizes = [1, 512], strides = [1, 1]} : vector<4x512xf32> to vector<1x512xf32>
    %156 = vector.broadcast %154 : vector<8x1xf32> to vector<8x512xf32>
    %157 = vector.broadcast %155 : vector<1x512xf32> to vector<8x512xf32>
    %158 = arith.mulf %156, %157 : vector<8x512xf32>
    %159 = arith.addf %153, %158 : vector<8x512xf32>
    %160 = vector.extract_strided_slice %13 {offsets = [0, 2], sizes = [8, 1], strides = [1, 1]} : vector<8x16xf32> to vector<8x1xf32>
    %161 = vector.extract_strided_slice %147 {offsets = [2, 0], sizes = [1, 512], strides = [1, 1]} : vector<4x512xf32> to vector<1x512xf32>
    %162 = vector.broadcast %160 : vector<8x1xf32> to vector<8x512xf32>
    %163 = vector.broadcast %161 : vector<1x512xf32> to vector<8x512xf32>
    %164 = arith.mulf %162, %163 : vector<8x512xf32>
    %165 = arith.addf %159, %164 : vector<8x512xf32>
    %166 = vector.extract_strided_slice %13 {offsets = [0, 3], sizes = [8, 1], strides = [1, 1]} : vector<8x16xf32> to vector<8x1xf32>
    %167 = vector.extract_strided_slice %147 {offsets = [3, 0], sizes = [1, 512], strides = [1, 1]} : vector<4x512xf32> to vector<1x512xf32>
    %168 = vector.broadcast %166 : vector<8x1xf32> to vector<8x512xf32>
    %169 = vector.broadcast %167 : vector<1x512xf32> to vector<8x512xf32>
    %170 = arith.mulf %168, %169 : vector<8x512xf32>
    %171 = arith.addf %165, %170 : vector<8x512xf32>
    %172 = vector.extract_strided_slice %145 {offsets = [0, 1], sizes = [4, 512], strides = [1, 1]} : vector<4x640xf32> to vector<4x512xf32>
    %173 = vector.extract_strided_slice %13 {offsets = [0, 4], sizes = [8, 1], strides = [1, 1]} : vector<8x16xf32> to vector<8x1xf32>
    %174 = vector.extract_strided_slice %172 {offsets = [0, 0], sizes = [1, 512], strides = [1, 1]} : vector<4x512xf32> to vector<1x512xf32>
    %175 = vector.broadcast %173 : vector<8x1xf32> to vector<8x512xf32>
    %176 = vector.broadcast %174 : vector<1x512xf32> to vector<8x512xf32>
    %177 = arith.mulf %175, %176 : vector<8x512xf32>
    %178 = arith.addf %171, %177 : vector<8x512xf32>
    %179 = vector.extract_strided_slice %13 {offsets = [0, 5], sizes = [8, 1], strides = [1, 1]} : vector<8x16xf32> to vector<8x1xf32>
    %180 = vector.extract_strided_slice %172 {offsets = [1, 0], sizes = [1, 512], strides = [1, 1]} : vector<4x512xf32> to vector<1x512xf32>
    %181 = vector.broadcast %179 : vector<8x1xf32> to vector<8x512xf32>
    %182 = vector.broadcast %180 : vector<1x512xf32> to vector<8x512xf32>
    %183 = arith.mulf %181, %182 : vector<8x512xf32>
    %184 = arith.addf %178, %183 : vector<8x512xf32>
    %185 = vector.extract_strided_slice %13 {offsets = [0, 6], sizes = [8, 1], strides = [1, 1]} : vector<8x16xf32> to vector<8x1xf32>
    %186 = vector.extract_strided_slice %172 {offsets = [2, 0], sizes = [1, 512], strides = [1, 1]} : vector<4x512xf32> to vector<1x512xf32>
    %187 = vector.broadcast %185 : vector<8x1xf32> to vector<8x512xf32>
    %188 = vector.broadcast %186 : vector<1x512xf32> to vector<8x512xf32>
    %189 = arith.mulf %187, %188 : vector<8x512xf32>
    %190 = arith.addf %184, %189 : vector<8x512xf32>
    %191 = vector.extract_strided_slice %13 {offsets = [0, 7], sizes = [8, 1], strides = [1, 1]} : vector<8x16xf32> to vector<8x1xf32>
    %192 = vector.extract_strided_slice %172 {offsets = [3, 0], sizes = [1, 512], strides = [1, 1]} : vector<4x512xf32> to vector<1x512xf32>
    %193 = vector.broadcast %191 : vector<8x1xf32> to vector<8x512xf32>
    %194 = vector.broadcast %192 : vector<1x512xf32> to vector<8x512xf32>
    %195 = arith.mulf %193, %194 : vector<8x512xf32>
    %196 = arith.addf %190, %195 : vector<8x512xf32>
    %197 = vector.extract_strided_slice %145 {offsets = [0, 16], sizes = [4, 512], strides = [1, 1]} : vector<4x640xf32> to vector<4x512xf32>
    %198 = vector.extract_strided_slice %13 {offsets = [0, 8], sizes = [8, 1], strides = [1, 1]} : vector<8x16xf32> to vector<8x1xf32>
    %199 = vector.extract_strided_slice %197 {offsets = [0, 0], sizes = [1, 512], strides = [1, 1]} : vector<4x512xf32> to vector<1x512xf32>
    %200 = vector.broadcast %198 : vector<8x1xf32> to vector<8x512xf32>
    %201 = vector.broadcast %199 : vector<1x512xf32> to vector<8x512xf32>
    %202 = arith.mulf %200, %201 : vector<8x512xf32>
    %203 = arith.addf %196, %202 : vector<8x512xf32>
    %204 = vector.extract_strided_slice %13 {offsets = [0, 9], sizes = [8, 1], strides = [1, 1]} : vector<8x16xf32> to vector<8x1xf32>
    %205 = vector.extract_strided_slice %197 {offsets = [1, 0], sizes = [1, 512], strides = [1, 1]} : vector<4x512xf32> to vector<1x512xf32>
    %206 = vector.broadcast %204 : vector<8x1xf32> to vector<8x512xf32>
    %207 = vector.broadcast %205 : vector<1x512xf32> to vector<8x512xf32>
    %208 = arith.mulf %206, %207 : vector<8x512xf32>
    %209 = arith.addf %203, %208 : vector<8x512xf32>
    %210 = vector.extract_strided_slice %13 {offsets = [0, 10], sizes = [8, 1], strides = [1, 1]} : vector<8x16xf32> to vector<8x1xf32>
    %211 = vector.extract_strided_slice %197 {offsets = [2, 0], sizes = [1, 512], strides = [1, 1]} : vector<4x512xf32> to vector<1x512xf32>
    %212 = vector.broadcast %210 : vector<8x1xf32> to vector<8x512xf32>
    %213 = vector.broadcast %211 : vector<1x512xf32> to vector<8x512xf32>
    %214 = arith.mulf %212, %213 : vector<8x512xf32>
    %215 = arith.addf %209, %214 : vector<8x512xf32>
    %216 = vector.extract_strided_slice %13 {offsets = [0, 11], sizes = [8, 1], strides = [1, 1]} : vector<8x16xf32> to vector<8x1xf32>
    %217 = vector.extract_strided_slice %197 {offsets = [3, 0], sizes = [1, 512], strides = [1, 1]} : vector<4x512xf32> to vector<1x512xf32>
    %218 = vector.broadcast %216 : vector<8x1xf32> to vector<8x512xf32>
    %219 = vector.broadcast %217 : vector<1x512xf32> to vector<8x512xf32>
    %220 = arith.mulf %218, %219 : vector<8x512xf32>
    %221 = arith.addf %215, %220 : vector<8x512xf32>
    %222 = vector.extract_strided_slice %145 {offsets = [0, 17], sizes = [4, 512], strides = [1, 1]} : vector<4x640xf32> to vector<4x512xf32>
    %223 = vector.extract_strided_slice %13 {offsets = [0, 12], sizes = [8, 1], strides = [1, 1]} : vector<8x16xf32> to vector<8x1xf32>
    %224 = vector.extract_strided_slice %222 {offsets = [0, 0], sizes = [1, 512], strides = [1, 1]} : vector<4x512xf32> to vector<1x512xf32>
    %225 = vector.broadcast %223 : vector<8x1xf32> to vector<8x512xf32>
    %226 = vector.broadcast %224 : vector<1x512xf32> to vector<8x512xf32>
    %227 = arith.mulf %225, %226 : vector<8x512xf32>
    %228 = arith.addf %221, %227 : vector<8x512xf32>
    %229 = vector.extract_strided_slice %13 {offsets = [0, 13], sizes = [8, 1], strides = [1, 1]} : vector<8x16xf32> to vector<8x1xf32>
    %230 = vector.extract_strided_slice %222 {offsets = [1, 0], sizes = [1, 512], strides = [1, 1]} : vector<4x512xf32> to vector<1x512xf32>
    %231 = vector.broadcast %229 : vector<8x1xf32> to vector<8x512xf32>
    %232 = vector.broadcast %230 : vector<1x512xf32> to vector<8x512xf32>
    %233 = arith.mulf %231, %232 : vector<8x512xf32>
    %234 = arith.addf %228, %233 : vector<8x512xf32>
    %235 = vector.extract_strided_slice %13 {offsets = [0, 14], sizes = [8, 1], strides = [1, 1]} : vector<8x16xf32> to vector<8x1xf32>
    %236 = vector.extract_strided_slice %222 {offsets = [2, 0], sizes = [1, 512], strides = [1, 1]} : vector<4x512xf32> to vector<1x512xf32>
    %237 = vector.broadcast %235 : vector<8x1xf32> to vector<8x512xf32>
    %238 = vector.broadcast %236 : vector<1x512xf32> to vector<8x512xf32>
    %239 = arith.mulf %237, %238 : vector<8x512xf32>
    %240 = arith.addf %234, %239 : vector<8x512xf32>
    %241 = vector.extract_strided_slice %13 {offsets = [0, 15], sizes = [8, 1], strides = [1, 1]} : vector<8x16xf32> to vector<8x1xf32>
    %242 = vector.extract_strided_slice %222 {offsets = [3, 0], sizes = [1, 512], strides = [1, 1]} : vector<4x512xf32> to vector<1x512xf32>
    %243 = vector.broadcast %241 : vector<8x1xf32> to vector<8x512xf32>
    %244 = vector.broadcast %242 : vector<1x512xf32> to vector<8x512xf32>
    %245 = arith.mulf %243, %244 : vector<8x512xf32>
    %246 = arith.addf %240, %245 : vector<8x512xf32>
    %247 = vector.broadcast %17 : vector<1x512xf32> to vector<8x512xf32>
    %248 = arith.mulf %246, %247 : vector<8x512xf32>
    %cst_24 = arith.constant dense<0.000000e+00> : vector<8xf32>
    %249 = vector.multi_reduction <add>, %248, %cst_24 [1] : vector<8x512xf32> to vector<8xf32>
    %250 = vector.shape_cast %249 : vector<8xf32> to vector<8x1xf32>
    %cst_25 = arith.constant 0.00255102036 : f32
    %251 = vector.broadcast %cst_25 : f32 to vector<8x1xf32>
    %252 = arith.mulf %250, %251 : vector<8x1xf32>
    %253 = vector.broadcast %252 : vector<8x1xf32> to vector<8x512xf32>
    %254 = arith.subf %246, %253 : vector<8x512xf32>
    %255 = vector.broadcast %17 : vector<1x512xf32> to vector<8x512xf32>
    %256 = arith.mulf %254, %255 : vector<8x512xf32>
    %257 = arith.mulf %256, %256 : vector<8x512xf32>
    %cst_26 = arith.constant dense<0.000000e+00> : vector<8xf32>
    %258 = vector.multi_reduction <add>, %257, %cst_26 [1] : vector<8x512xf32> to vector<8xf32>
    %259 = vector.shape_cast %258 : vector<8xf32> to vector<8x1xf32>
    %cst_27 = arith.constant 0.00255102036 : f32
    %260 = vector.broadcast %cst_27 : f32 to vector<8x1xf32>
    %261 = arith.mulf %259, %260 : vector<8x1xf32>
    %cst_28 = arith.constant 9.99999974E-6 : f32
    %262 = vector.broadcast %cst_28 : f32 to vector<8x1xf32>
    %263 = arith.addf %261, %262 : vector<8x1xf32>
    %264 = math.rsqrt %263 : vector<8x1xf32>
    %265 = arith.mulf %14, %264 : vector<8x1xf32>
    %266 = arith.mulf %252, %265 : vector<8x1xf32>
    %267 = arith.subf %15, %266 : vector<8x1xf32>
    %268 = vector.broadcast %265 : vector<8x1xf32> to vector<8x512xf32>
    %269 = arith.mulf %246, %268 : vector<8x512xf32>
    %270 = vector.broadcast %267 : vector<8x1xf32> to vector<8x512xf32>
    %271 = arith.addf %269, %270 : vector<8x512xf32>
    %cst_29 = arith.constant 0.000000e+00 : f32
    %272 = vector.broadcast %cst_29 : f32 to vector<8x512xf32>
    %273 = arith.maximumf %271, %272 : vector<8x512xf32>
    %274 = vector.extract_strided_slice %273 {offsets = [0, 0], sizes = [8, 256], strides = [1, 1]} : vector<8x512xf32> to vector<8x256xf32>
    %c0_30 = arith.constant 0 : index
    %c0_31 = arith.constant 0 : index
    %c0_32 = arith.constant 0 : index
    %275 = vector.load %arg3[%c0_30, %c0_31, %c0_32] : memref<2x8x256xf32, #tpu.memory_space<vmem>>, vector<1x8x256xf32>
    %276 = vector.shape_cast %275 : vector<1x8x256xf32> to vector<8x256xf32>
    %277 = vector.shape_cast %274 : vector<8x256xf32> to vector<1x8x256xf32>
    tpu.vector_store %arg3[%c0_30, %c0_31, %c0_32], %277 {strides = array<i32>} : memref<2x8x256xf32, #tpu.memory_space<vmem>>, vector<1x8x256xf32>,
    %278 = vector.extract_strided_slice %273 {offsets = [0, 256], sizes = [8, 256], strides = [1, 1]} : vector<8x512xf32> to vector<8x256xf32>
    %c1_33 = arith.constant 1 : index
    %c0_34 = arith.constant 0 : index
    %c0_35 = arith.constant 0 : index
    %279 = vector.load %arg3[%c1_33, %c0_34, %c0_35] : memref<2x8x256xf32, #tpu.memory_space<vmem>>, vector<1x8x256xf32>
    %280 = vector.shape_cast %279 : vector<1x8x256xf32> to vector<8x256xf32>
    %281 = vector.shape_cast %278 : vector<8x256xf32> to vector<1x8x256xf32>
    tpu.vector_store %arg3[%c1_33, %c0_34, %c0_35], %281 {strides = array<i32>} : memref<2x8x256xf32, #tpu.memory_space<vmem>>, vector<1x8x256xf32>,
    return
  }
}

</mosaic_0001>

<llo_original>
// kernel: final_block_forward.1
$region0: #{final_block_forward.1}
  #allocation0 [shape = 'u32[]', space=smem, size = 0x4, offset = 0x4, fixed_abs, tag = 'smem constant byte address 0x4 - core index']
  #allocation1 [shape = 'u32[144,128]{1,0:T(1,128)}', space=vmem, size = 0x12000, scoped, tag = 'internal scratch']
  #allocation2 [shape = 'f32[4,768]{1,0:T(4,128)}', space=vmem, size = 0x3000, scoped, tag = 'scratch operand']
  %s0 = inlined_call_operand.vmem [shape: f32[2,4,256], index: 0, kind: input, shape index: {}]
  %s1 = inlined_call_operand.vmem [shape: f32[12,18], index: 1, kind: input, shape index: {}]
  %s2 = inlined_call_operand.vmem [shape: f32[2,640], index: 2, kind: input, shape index: {}]
  %s3 = inlined_call_operand.vmem [shape: f32[2,8,256], index: 3, kind: output, shape index: {}]
  %s4 = sld [smem:[#allocation0]]
  $region22: #{final_block_forward.1} parent=0
    _
  %s6 = ssub.s32 1, %s4
  %s7 = scalar_select 0, %s6, %s4
  // Predicated region
  $region2: #{final_block_forward.1} parent=0 // pred_check
    _
  $region3: #{final_block_forward.1} parent=0 // pred_check_branch
    %9 = sbr.rel (0) target = $region5
  $region4: #{final_block_forward.1} parent=0 // pred_region
    _
  $region5: #{final_block_forward.1} parent=0 // pred_fallthru
    _
  // Predicated region
  $region6: #{final_block_forward.1} parent=0 // pred_check
    _
  $region7: #{final_block_forward.1} parent=0 // pred_check_branch
    %11 = sbr.rel (0) target = $region9
  $region8: #{final_block_forward.1} parent=0 // pred_region
    _
  $region9: #{final_block_forward.1} parent=0 // pred_fallthru
    _
  // Predicated region
  $region10: #{final_block_forward.1} parent=0 // pred_check
    _
  $region11: #{final_block_forward.1} parent=0 // pred_check_branch
    %13 = sbr.rel (0) target = $region13
  $region12: #{final_block_forward.1} parent=0 // pred_region
    _
  $region13: #{final_block_forward.1} parent=0 // pred_fallthru
    _
  %v14 = vld [vmem:[%s0] sm:$0xff]
  %15 = vst [vmem:[#allocation2] sm:$0xff] %v14
  %s16 = scalar_lea.vmem %s0, 8
  %v17 = vld [vmem:[%s16] sm:$0xff]
  %18 = vst [vmem:[#allocation2 + $0x8] sm:$0xff] %v17
  %19 = vst [vmem:[#allocation2 + $0x10] sm:$0xff] 0.0
  %v20 = vld [vmem:[#allocation2] sm:$0xff]
  %v21 = vld [vmem:[#allocation2 + $0x8] sm:$0xff]
  %v22 = vld [vmem:[#allocation2 + $0x10] sm:$0xff]
  %v23 = vld [vmem:[%s1] sm:$0xff]
  %v24 = vld [vmem:[%s1 + $0x8] sm:$0xf]
  %v25 = vld [vmem:[%s2] ss:$2 sm:$0x1f]
  %s26 = scalar_lea.vmem %s2, 1
  %v27 = vld [vmem:[%s26] ss:$2 sm:$0xf]
  %29 = vset.pattern.permute.xlu0 0
  %30 = vperm.xlu0 %29, %v23
  %v31 = vpop.permute.xlu0 %30
  %v36 = vlaneseq
  %v37 = vshrl.u32 %v36, 7
  %v38 = vsub.s32 0, %v37
  %v39 = vrot.slane %v20, %v38
  %v40 = vlaneseq
  %v41 = vshrl.u32 %v40, 7
  %v42 = vsub.s32 4, %v41
  %v43 = vrot.slane %v20, %v42
  %v44 = vlaneseq
  %v45 = vshrl.u32 %v44, 7
  %v46 = vsub.s32 0, %v45
  %v47 = vrot.slane %v21, %v46
  %v48 = vlaneseq
  %v49 = vshrl.u32 %v48, 7
  %v50 = vsub.s32 4, %v49
  %v51 = vrot.slane %v21, %v50
  %v52 = vlaneseq
  %v53 = vshrl.u32 %v52, 7
  %v54 = vsub.s32 0, %v53
  %v55 = vrot.slane %v22, %v54
  %v61 = vlaneseq
  %v62 = vshrl.u32 %v61, 7
  %v63 = vsub.s32 0, %v62
  %v64 = vrot.slane %v39, %v63
  %v65 = vlaneseq
  %v66 = vshrl.u32 %v65, 7
  %v67 = vsub.s32 0, %v66
  %v68 = vrot.slane %v43, %v67
  %v69 = vlaneseq
  %v70 = vshrl.u32 %v69, 7
  %v71 = vsub.s32 0, %v70
  %v72 = vrot.slane %v47, %v71
  %v73 = vlaneseq
  %v74 = vshrl.u32 %v73, 7
  %v75 = vsub.s32 0, %v74
  %v76 = vrot.slane %v51, %v75
  %v77 = vlaneseq
  %v78 = vshrl.u32 %v77, 7
  %v79 = vsub.s32 0, %v78
  %v80 = vrot.slane %v55, %v79
  %v81 = vmul.f32 %v31, %v64
  %v82 = vmul.f32 %v31, %v68
  %v83 = vmul.f32 %v31, %v72
  %v84 = vmul.f32 %v31, %v76
  %v85 = vmul.f32 %v31, %v80
  %v86 = vadd.f32 %v81, 0.0
  %v87 = vadd.f32 %v82, 0.0
  %v88 = vadd.f32 %v83, 0.0
  %v89 = vadd.f32 %v84, 0.0
  %v90 = vadd.f32 %v85, 0.0
  %91 = vset.pattern.permute.xlu0 1
  %92 = vperm.xlu0 %91, %v23
  %v93 = vpop.permute.xlu0 %92
  %v95 = vlaneseq
  %v96 = vshrl.u32 %v95, 7
  %v97 = vsub.s32 1, %v96
  %v98 = vrot.slane %v20, %v97
  %v99 = vlaneseq
  %v100 = vshrl.u32 %v99, 7
  %v101 = vsub.s32 5, %v100
  %v102 = vrot.slane %v20, %v101
  %v103 = vlaneseq
  %v104 = vshrl.u32 %v103, 7
  %v105 = vsub.s32 1, %v104
  %v106 = vrot.slane %v21, %v105
  %v107 = vlaneseq
  %v108 = vshrl.u32 %v107, 7
  %v109 = vsub.s32 5, %v108
  %v110 = vrot.slane %v21, %v109
  %v111 = vlaneseq
  %v112 = vshrl.u32 %v111, 7
  %v113 = vsub.s32 1, %v112
  %v114 = vrot.slane %v22, %v113
  %v120 = vlaneseq
  %v121 = vshrl.u32 %v120, 7
  %v122 = vsub.s32 1, %v121
  %v123 = vrot.slane %v98, %v122
  %v124 = vlaneseq
  %v125 = vshrl.u32 %v124, 7
  %v126 = vsub.s32 1, %v125
  %v127 = vrot.slane %v102, %v126
  %v128 = vlaneseq
  %v129 = vshrl.u32 %v128, 7
  %v130 = vsub.s32 1, %v129
  %v131 = vrot.slane %v106, %v130
  %v132 = vlaneseq
  %v133 = vshrl.u32 %v132, 7
  %v134 = vsub.s32 1, %v133
  %v135 = vrot.slane %v110, %v134
  %v136 = vlaneseq
  %v137 = vshrl.u32 %v136, 7
  %v138 = vsub.s32 1, %v137
  %v139 = vrot.slane %v114, %v138
  %v140 = vmul.f32 %v93, %v123
  %v141 = vmul.f32 %v93, %v127
  %v142 = vmul.f32 %v93, %v131
  %v143 = vmul.f32 %v93, %v135
  %v144 = vmul.f32 %v93, %v139
  %v145 = vadd.f32 %v86, %v140
  %v146 = vadd.f32 %v87, %v141
  %v147 = vadd.f32 %v88, %v142
  %v148 = vadd.f32 %v89, %v143
  %v149 = vadd.f32 %v90, %v144
  %150 = vset.pattern.permute.xlu0 2
  %151 = vperm.xlu0 %150, %v23
  %v152 = vpop.permute.xlu0 %151
  %v154 = vlaneseq
  %v155 = vshrl.u32 %v154, 7
  %v156 = vsub.s32 2, %v155
  %v157 = vrot.slane %v20, %v156
  %v158 = vlaneseq
  %v159 = vshrl.u32 %v158, 7
  %v160 = vsub.s32 6, %v159
  %v161 = vrot.slane %v20, %v160
  %v162 = vlaneseq
  %v163 = vshrl.u32 %v162, 7
  %v164 = vsub.s32 2, %v163
  %v165 = vrot.slane %v21, %v164
  %v166 = vlaneseq
  %v167 = vshrl.u32 %v166, 7
  %v168 = vsub.s32 6, %v167
  %v169 = vrot.slane %v21, %v168
  %v170 = vlaneseq
  %v171 = vshrl.u32 %v170, 7
  %v172 = vsub.s32 2, %v171
  %v173 = vrot.slane %v22, %v172
  %v179 = vlaneseq
  %v180 = vshrl.u32 %v179, 7
  %v181 = vsub.s32 2, %v180
  %v182 = vrot.slane %v157, %v181
  %v183 = vlaneseq
  %v184 = vshrl.u32 %v183, 7
  %v185 = vsub.s32 2, %v184
  %v186 = vrot.slane %v161, %v185
  %v187 = vlaneseq
  %v188 = vshrl.u32 %v187, 7
  %v189 = vsub.s32 2, %v188
  %v190 = vrot.slane %v165, %v189
  %v191 = vlaneseq
  %v192 = vshrl.u32 %v191, 7
  %v193 = vsub.s32 2, %v192
  %v194 = vrot.slane %v169, %v193
  %v195 = vlaneseq
  %v196 = vshrl.u32 %v195, 7
  %v197 = vsub.s32 2, %v196
  %v198 = vrot.slane %v173, %v197
  %v199 = vmul.f32 %v152, %v182
  %v200 = vmul.f32 %v152, %v186
  %v201 = vmul.f32 %v152, %v190
  %v202 = vmul.f32 %v152, %v194
  %v203 = vmul.f32 %v152, %v198
  %v204 = vadd.f32 %v145, %v199
  %v205 = vadd.f32 %v146, %v200
  %v206 = vadd.f32 %v147, %v201
  %v207 = vadd.f32 %v148, %v202
  %v208 = vadd.f32 %v149, %v203
  %209 = vset.pattern.permute.xlu0 3
  %210 = vperm.xlu0 %209, %v23
  %v211 = vpop.permute.xlu0 %210
  %v213 = vlaneseq
  %v214 = vshrl.u32 %v213, 7
  %v215 = vsub.s32 3, %v214
  %v216 = vrot.slane %v20, %v215
  %v217 = vlaneseq
  %v218 = vshrl.u32 %v217, 7
  %v219 = vsub.s32 7, %v218
  %v220 = vrot.slane %v20, %v219
  %v221 = vlaneseq
  %v222 = vshrl.u32 %v221, 7
  %v223 = vsub.s32 3, %v222
  %v224 = vrot.slane %v21, %v223
  %v225 = vlaneseq
  %v226 = vshrl.u32 %v225, 7
  %v227 = vsub.s32 7, %v226
  %v228 = vrot.slane %v21, %v227
  %v229 = vlaneseq
  %v230 = vshrl.u32 %v229, 7
  %v231 = vsub.s32 3, %v230
  %v232 = vrot.slane %v22, %v231
  %v238 = vlaneseq
  %v239 = vshrl.u32 %v238, 7
  %v240 = vsub.s32 3, %v239
  %v241 = vrot.slane %v216, %v240
  %v242 = vlaneseq
  %v243 = vshrl.u32 %v242, 7
  %v244 = vsub.s32 3, %v243
  %v245 = vrot.slane %v220, %v244
  %v246 = vlaneseq
  %v247 = vshrl.u32 %v246, 7
  %v248 = vsub.s32 3, %v247
  %v249 = vrot.slane %v224, %v248
  %v250 = vlaneseq
  %v251 = vshrl.u32 %v250, 7
  %v252 = vsub.s32 3, %v251
  %v253 = vrot.slane %v228, %v252
  %v254 = vlaneseq
  %v255 = vshrl.u32 %v254, 7
  %v256 = vsub.s32 3, %v255
  %v257 = vrot.slane %v232, %v256
  %v258 = vmul.f32 %v211, %v241
  %v259 = vmul.f32 %v211, %v245
  %v260 = vmul.f32 %v211, %v249
  %v261 = vmul.f32 %v211, %v253
  %v262 = vmul.f32 %v211, %v257
  %v263 = vadd.f32 %v204, %v258
  %v264 = vadd.f32 %v205, %v259
  %v265 = vadd.f32 %v206, %v260
  %v266 = vadd.f32 %v207, %v261
  %v267 = vadd.f32 %v208, %v262
  %268 = vset.pattern.permute.xlu0 4
  %269 = vperm.xlu0 %268, %v23
  %v270 = vpop.permute.xlu0 %269
  %v272 = vlaneseq
  %v273 = vshrl.u32 %v272, 7
  %v274 = vsub.s32 4, %v273
  %v275 = vrot.slane %v22, %v274
  %v277 = vlaneseq
  %v278 = vshrl.u32 %v277, 7
  %v279 = vsub.s32 0, %v278
  %v280 = vrot.slane %v275, %v279
  %v281 = vmul.f32 %v270, %v64
  %v282 = vmul.f32 %v270, %v68
  %v283 = vmul.f32 %v270, %v72
  %v284 = vmul.f32 %v270, %v76
  %v285 = vmul.f32 %v270, %v80
  %v286 = vmul.f32 %v270, %v280
  %293 = vrot.lane.b32.xlu0 %v281, 127
  %v294 = vpop.permute.xlu0 %293
  %295 = vrot.lane.b32.xlu0 %v282, 127
  %v296 = vpop.permute.xlu0 %295
  %297 = vrot.lane.b32.xlu0 %v283, 127
  %v298 = vpop.permute.xlu0 %297
  %299 = vrot.lane.b32.xlu0 %v284, 127
  %v300 = vpop.permute.xlu0 %299
  %301 = vrot.lane.b32.xlu0 %v285, 127
  %v302 = vpop.permute.xlu0 %301
  %303 = vrot.lane.b32.xlu0 %v286, 127
  %v304 = vpop.permute.xlu0 %303
  %vm305 = vcmask 1039360
  %v306 = vsel %vm305, %v294, %v296
  %v307 = vsel %vm305, %v296, %v298
  %v308 = vsel %vm305, %v298, %v300
  %v309 = vsel %vm305, %v300, %v302
  %v310 = vsel %vm305, %v302, %v304
  %v316 = vadd.f32 %v263, %v306
  %v317 = vadd.f32 %v264, %v307
  %v318 = vadd.f32 %v265, %v308
  %v319 = vadd.f32 %v266, %v309
  %v320 = vadd.f32 %v267, %v310
  %321 = vset.pattern.permute.xlu0 5
  %322 = vperm.xlu0 %321, %v23
  %v323 = vpop.permute.xlu0 %322
  %v325 = vlaneseq
  %v326 = vshrl.u32 %v325, 7
  %v327 = vsub.s32 5, %v326
  %v328 = vrot.slane %v22, %v327
  %v330 = vlaneseq
  %v331 = vshrl.u32 %v330, 7
  %v332 = vsub.s32 1, %v331
  %v333 = vrot.slane %v328, %v332
  %v334 = vmul.f32 %v323, %v123
  %v335 = vmul.f32 %v323, %v127
  %v336 = vmul.f32 %v323, %v131
  %v337 = vmul.f32 %v323, %v135
  %v338 = vmul.f32 %v323, %v139
  %v339 = vmul.f32 %v323, %v333
  %346 = vrot.lane.b32.xlu0 %v334, 127
  %v347 = vpop.permute.xlu0 %346
  %348 = vrot.lane.b32.xlu0 %v335, 127
  %v349 = vpop.permute.xlu0 %348
  %350 = vrot.lane.b32.xlu0 %v336, 127
  %v351 = vpop.permute.xlu0 %350
  %352 = vrot.lane.b32.xlu0 %v337, 127
  %v353 = vpop.permute.xlu0 %352
  %354 = vrot.lane.b32.xlu0 %v338, 127
  %v355 = vpop.permute.xlu0 %354
  %356 = vrot.lane.b32.xlu0 %v339, 127
  %v357 = vpop.permute.xlu0 %356
  %v358 = vsel %vm305, %v347, %v349
  %v359 = vsel %vm305, %v349, %v351
  %v360 = vsel %vm305, %v351, %v353
  %v361 = vsel %vm305, %v353, %v355
  %v362 = vsel %vm305, %v355, %v357
  %v368 = vadd.f32 %v316, %v358
  %v369 = vadd.f32 %v317, %v359
  %v370 = vadd.f32 %v318, %v360
  %v371 = vadd.f32 %v319, %v361
  %v372 = vadd.f32 %v320, %v362
  %373 = vset.pattern.permute.xlu0 6
  %374 = vperm.xlu0 %373, %v23
  %v375 = vpop.permute.xlu0 %374
  %v377 = vlaneseq
  %v378 = vshrl.u32 %v377, 7
  %v379 = vsub.s32 6, %v378
  %v380 = vrot.slane %v22, %v379
  %v382 = vlaneseq
  %v383 = vshrl.u32 %v382, 7
  %v384 = vsub.s32 2, %v383
  %v385 = vrot.slane %v380, %v384
  %v386 = vmul.f32 %v375, %v182
  %v387 = vmul.f32 %v375, %v186
  %v388 = vmul.f32 %v375, %v190
  %v389 = vmul.f32 %v375, %v194
  %v390 = vmul.f32 %v375, %v198
  %v391 = vmul.f32 %v375, %v385
  %398 = vrot.lane.b32.xlu0 %v386, 127
  %v399 = vpop.permute.xlu0 %398
  %400 = vrot.lane.b32.xlu0 %v387, 127
  %v401 = vpop.permute.xlu0 %400
  %402 = vrot.lane.b32.xlu0 %v388, 127
  %v403 = vpop.permute.xlu0 %402
  %404 = vrot.lane.b32.xlu0 %v389, 127
  %v405 = vpop.permute.xlu0 %404
  %406 = vrot.lane.b32.xlu0 %v390, 127
  %v407 = vpop.permute.xlu0 %406
  %408 = vrot.lane.b32.xlu0 %v391, 127
  %v409 = vpop.permute.xlu0 %408
  %v410 = vsel %vm305, %v399, %v401
  %v411 = vsel %vm305, %v401, %v403
  %v412 = vsel %vm305, %v403, %v405
  %v413 = vsel %vm305, %v405, %v407
  %v414 = vsel %vm305, %v407, %v409
  %v420 = vadd.f32 %v368, %v410
  %v421 = vadd.f32 %v369, %v411
  %v422 = vadd.f32 %v370, %v412
  %v423 = vadd.f32 %v371, %v413
  %v424 = vadd.f32 %v372, %v414
  %425 = vset.pattern.permute.xlu0 7
  %426 = vperm.xlu0 %425, %v23
  %v427 = vpop.permute.xlu0 %426
  %v429 = vlaneseq
  %v430 = vshrl.u32 %v429, 7
  %v431 = vsub.s32 7, %v430
  %v432 = vrot.slane %v22, %v431
  %v434 = vlaneseq
  %v435 = vshrl.u32 %v434, 7
  %v436 = vsub.s32 3, %v435
  %v437 = vrot.slane %v432, %v436
  %v438 = vmul.f32 %v427, %v241
  %v439 = vmul.f32 %v427, %v245
  %v440 = vmul.f32 %v427, %v249
  %v441 = vmul.f32 %v427, %v253
  %v442 = vmul.f32 %v427, %v257
  %v443 = vmul.f32 %v427, %v437
  %450 = vrot.lane.b32.xlu0 %v438, 127
  %v451 = vpop.permute.xlu0 %450
  %452 = vrot.lane.b32.xlu0 %v439, 127
  %v453 = vpop.permute.xlu0 %452
  %454 = vrot.lane.b32.xlu0 %v440, 127
  %v455 = vpop.permute.xlu0 %454
  %456 = vrot.lane.b32.xlu0 %v441, 127
  %v457 = vpop.permute.xlu0 %456
  %458 = vrot.lane.b32.xlu0 %v442, 127
  %v459 = vpop.permute.xlu0 %458
  %460 = vrot.lane.b32.xlu0 %v443, 127
  %v461 = vpop.permute.xlu0 %460
  %v462 = vsel %vm305, %v451, %v453
  %v463 = vsel %vm305, %v453, %v455
  %v464 = vsel %vm305, %v455, %v457
  %v465 = vsel %vm305, %v457, %v459
  %v466 = vsel %vm305, %v459, %v461
  %v472 = vadd.f32 %v420, %v462
  %v473 = vadd.f32 %v421, %v463
  %v474 = vadd.f32 %v422, %v464
  %v475 = vadd.f32 %v423, %v465
  %v476 = vadd.f32 %v424, %v466
  %477 = vset.pattern.permute.xlu0 8
  %478 = vperm.xlu0 %477, %v23
  %v479 = vpop.permute.xlu0 %478
  %v481 = vmul.f32 %v479, %v64
  %v482 = vmul.f32 %v479, %v68
  %v483 = vmul.f32 %v479, %v72
  %v484 = vmul.f32 %v479, %v76
  %v485 = vmul.f32 %v479, %v80
  %v486 = vmul.f32 %v479, %v280
  %493 = vrot.lane.b32.xlu0 %v481, 112
  %v494 = vpop.permute.xlu0 %493
  %495 = vrot.lane.b32.xlu0 %v482, 112
  %v496 = vpop.permute.xlu0 %495
  %497 = vrot.lane.b32.xlu0 %v483, 112
  %v498 = vpop.permute.xlu0 %497
  %499 = vrot.lane.b32.xlu0 %v484, 112
  %v500 = vpop.permute.xlu0 %499
  %501 = vrot.lane.b32.xlu0 %v485, 112
  %v502 = vpop.permute.xlu0 %501
  %503 = vrot.lane.b32.xlu0 %v486, 112
  %v504 = vpop.permute.xlu0 %503
  %vm505 = vcmask 916480
  %v506 = vsel %vm505, %v494, %v496
  %v507 = vsel %vm505, %v496, %v498
  %v508 = vsel %vm505, %v498, %v500
  %v509 = vsel %vm505, %v500, %v502
  %v510 = vsel %vm505, %v502, %v504
  %v516 = vadd.f32 %v472, %v506
  %v517 = vadd.f32 %v473, %v507
  %v518 = vadd.f32 %v474, %v508
  %v519 = vadd.f32 %v475, %v509
  %v520 = vadd.f32 %v476, %v510
  %521 = vset.pattern.permute.xlu0 9
  %522 = vperm.xlu0 %521, %v23
  %v523 = vpop.permute.xlu0 %522
  %v525 = vmul.f32 %v523, %v123
  %v526 = vmul.f32 %v523, %v127
  %v527 = vmul.f32 %v523, %v131
  %v528 = vmul.f32 %v523, %v135
  %v529 = vmul.f32 %v523, %v139
  %v530 = vmul.f32 %v523, %v333
  %537 = vrot.lane.b32.xlu0 %v525, 112
  %v538 = vpop.permute.xlu0 %537
  %539 = vrot.lane.b32.xlu0 %v526, 112
  %v540 = vpop.permute.xlu0 %539
  %541 = vrot.lane.b32.xlu0 %v527, 112
  %v542 = vpop.permute.xlu0 %541
  %543 = vrot.lane.b32.xlu0 %v528, 112
  %v544 = vpop.permute.xlu0 %543
  %545 = vrot.lane.b32.xlu0 %v529, 112
  %v546 = vpop.permute.xlu0 %545
  %547 = vrot.lane.b32.xlu0 %v530, 112
  %v548 = vpop.permute.xlu0 %547
  %v549 = vsel %vm505, %v538, %v540
  %v550 = vsel %vm505, %v540, %v542
  %v551 = vsel %vm505, %v542, %v544
  %v552 = vsel %vm505, %v544, %v546
  %v553 = vsel %vm505, %v546, %v548
  %v559 = vadd.f32 %v516, %v549
  %v560 = vadd.f32 %v517, %v550
  %v561 = vadd.f32 %v518, %v551
  %v562 = vadd.f32 %v519, %v552
  %v563 = vadd.f32 %v520, %v553
  %564 = vset.pattern.permute.xlu0 10
  %565 = vperm.xlu0 %564, %v23
  %v566 = vpop.permute.xlu0 %565
  %v568 = vmul.f32 %v566, %v182
  %v569 = vmul.f32 %v566, %v186
  %v570 = vmul.f32 %v566, %v190
  %v571 = vmul.f32 %v566, %v194
  %v572 = vmul.f32 %v566, %v198
  %v573 = vmul.f32 %v566, %v385
  %580 = vrot.lane.b32.xlu0 %v568, 112
  %v581 = vpop.permute.xlu0 %580
  %582 = vrot.lane.b32.xlu0 %v569, 112
  %v583 = vpop.permute.xlu0 %582
  %584 = vrot.lane.b32.xlu0 %v570, 112
  %v585 = vpop.permute.xlu0 %584
  %586 = vrot.lane.b32.xlu0 %v571, 112
  %v587 = vpop.permute.xlu0 %586
  %588 = vrot.lane.b32.xlu0 %v572, 112
  %v589 = vpop.permute.xlu0 %588
  %590 = vrot.lane.b32.xlu0 %v573, 112
  %v591 = vpop.permute.xlu0 %590
  %v592 = vsel %vm505, %v581, %v583
  %v593 = vsel %vm505, %v583, %v585
  %v594 = vsel %vm505, %v585, %v587
  %v595 = vsel %vm505, %v587, %v589
  %v596 = vsel %vm505, %v589, %v591
  %v602 = vadd.f32 %v559, %v592
  %v603 = vadd.f32 %v560, %v593
  %v604 = vadd.f32 %v561, %v594
  %v605 = vadd.f32 %v562, %v595
  %v606 = vadd.f32 %v563, %v596
  %607 = vset.pattern.permute.xlu0 11
  %608 = vperm.xlu0 %607, %v23
  %v609 = vpop.permute.xlu0 %608
  %v611 = vmul.f32 %v609, %v241
  %v612 = vmul.f32 %v609, %v245
  %v613 = vmul.f32 %v609, %v249
  %v614 = vmul.f32 %v609, %v253
  %v615 = vmul.f32 %v609, %v257
  %v616 = vmul.f32 %v609, %v437
  %623 = vrot.lane.b32.xlu0 %v611, 112
  %v624 = vpop.permute.xlu0 %623
  %625 = vrot.lane.b32.xlu0 %v612, 112
  %v626 = vpop.permute.xlu0 %625
  %627 = vrot.lane.b32.xlu0 %v613, 112
  %v628 = vpop.permute.xlu0 %627
  %629 = vrot.lane.b32.xlu0 %v614, 112
  %v630 = vpop.permute.xlu0 %629
  %631 = vrot.lane.b32.xlu0 %v615, 112
  %v632 = vpop.permute.xlu0 %631
  %633 = vrot.lane.b32.xlu0 %v616, 112
  %v634 = vpop.permute.xlu0 %633
  %v635 = vsel %vm505, %v624, %v626
  %v636 = vsel %vm505, %v626, %v628
  %v637 = vsel %vm505, %v628, %v630
  %v638 = vsel %vm505, %v630, %v632
  %v639 = vsel %vm505, %v632, %v634
  %v645 = vadd.f32 %v602, %v635
  %v646 = vadd.f32 %v603, %v636
  %v647 = vadd.f32 %v604, %v637
  %v648 = vadd.f32 %v605, %v638
  %v649 = vadd.f32 %v606, %v639
  %650 = vset.pattern.permute.xlu0 12
  %651 = vperm.xlu0 %650, %v23
  %v652 = vpop.permute.xlu0 %651
  %v654 = vmul.f32 %v652, %v64
  %v655 = vmul.f32 %v652, %v68
  %v656 = vmul.f32 %v652, %v72
  %v657 = vmul.f32 %v652, %v76
  %v658 = vmul.f32 %v652, %v80
  %v659 = vmul.f32 %v652, %v280
  %666 = vrot.lane.b32.xlu0 %v654, 111
  %v667 = vpop.permute.xlu0 %666
  %668 = vrot.lane.b32.xlu0 %v655, 111
  %v669 = vpop.permute.xlu0 %668
  %670 = vrot.lane.b32.xlu0 %v656, 111
  %v671 = vpop.permute.xlu0 %670
  %672 = vrot.lane.b32.xlu0 %v657, 111
  %v673 = vpop.permute.xlu0 %672
  %674 = vrot.lane.b32.xlu0 %v658, 111
  %v675 = vpop.permute.xlu0 %674
  %676 = vrot.lane.b32.xlu0 %v659, 111
  %v677 = vpop.permute.xlu0 %676
  %vm678 = vcmask 908288
  %v679 = vsel %vm678, %v667, %v669
  %v680 = vsel %vm678, %v669, %v671
  %v681 = vsel %vm678, %v671, %v673
  %v682 = vsel %vm678, %v673, %v675
  %v683 = vsel %vm678, %v675, %v677
  %v689 = vadd.f32 %v645, %v679
  %v690 = vadd.f32 %v646, %v680
  %v691 = vadd.f32 %v647, %v681
  %v692 = vadd.f32 %v648, %v682
  %v693 = vadd.f32 %v649, %v683
  %694 = vset.pattern.permute.xlu0 13
  %695 = vperm.xlu0 %694, %v23
  %v696 = vpop.permute.xlu0 %695
  %v698 = vmul.f32 %v696, %v123
  %v699 = vmul.f32 %v696, %v127
  %v700 = vmul.f32 %v696, %v131
  %v701 = vmul.f32 %v696, %v135
  %v702 = vmul.f32 %v696, %v139
  %v703 = vmul.f32 %v696, %v333
  %710 = vrot.lane.b32.xlu0 %v698, 111
  %v711 = vpop.permute.xlu0 %710
  %712 = vrot.lane.b32.xlu0 %v699, 111
  %v713 = vpop.permute.xlu0 %712
  %714 = vrot.lane.b32.xlu0 %v700, 111
  %v715 = vpop.permute.xlu0 %714
  %716 = vrot.lane.b32.xlu0 %v701, 111
  %v717 = vpop.permute.xlu0 %716
  %718 = vrot.lane.b32.xlu0 %v702, 111
  %v719 = vpop.permute.xlu0 %718
  %720 = vrot.lane.b32.xlu0 %v703, 111
  %v721 = vpop.permute.xlu0 %720
  %v722 = vsel %vm678, %v711, %v713
  %v723 = vsel %vm678, %v713, %v715
  %v724 = vsel %vm678, %v715, %v717
  %v725 = vsel %vm678, %v717, %v719
  %v726 = vsel %vm678, %v719, %v721
  %v732 = vadd.f32 %v689, %v722
  %v733 = vadd.f32 %v690, %v723
  %v734 = vadd.f32 %v691, %v724
  %v735 = vadd.f32 %v692, %v725
  %v736 = vadd.f32 %v693, %v726
  %737 = vset.pattern.permute.xlu0 14
  %738 = vperm.xlu0 %737, %v23
  %v739 = vpop.permute.xlu0 %738
  %v741 = vmul.f32 %v739, %v182
  %v742 = vmul.f32 %v739, %v186
  %v743 = vmul.f32 %v739, %v190
  %v744 = vmul.f32 %v739, %v194
  %v745 = vmul.f32 %v739, %v198
  %v746 = vmul.f32 %v739, %v385
  %753 = vrot.lane.b32.xlu0 %v741, 111
  %v754 = vpop.permute.xlu0 %753
  %755 = vrot.lane.b32.xlu0 %v742, 111
  %v756 = vpop.permute.xlu0 %755
  %757 = vrot.lane.b32.xlu0 %v743, 111
  %v758 = vpop.permute.xlu0 %757
  %759 = vrot.lane.b32.xlu0 %v744, 111
  %v760 = vpop.permute.xlu0 %759
  %761 = vrot.lane.b32.xlu0 %v745, 111
  %v762 = vpop.permute.xlu0 %761
  %763 = vrot.lane.b32.xlu0 %v746, 111
  %v764 = vpop.permute.xlu0 %763
  %v765 = vsel %vm678, %v754, %v756
  %v766 = vsel %vm678, %v756, %v758
  %v767 = vsel %vm678, %v758, %v760
  %v768 = vsel %vm678, %v760, %v762
  %v769 = vsel %vm678, %v762, %v764
  %v775 = vadd.f32 %v732, %v765
  %v776 = vadd.f32 %v733, %v766
  %v777 = vadd.f32 %v734, %v767
  %v778 = vadd.f32 %v735, %v768
  %v779 = vadd.f32 %v736, %v769
  %780 = vset.pattern.permute.xlu0 15
  %781 = vperm.xlu0 %780, %v23
  %v782 = vpop.permute.xlu0 %781
  %v784 = vmul.f32 %v782, %v241
  %v785 = vmul.f32 %v782, %v245
  %v786 = vmul.f32 %v782, %v249
  %v787 = vmul.f32 %v782, %v253
  %v788 = vmul.f32 %v782, %v257
  %v789 = vmul.f32 %v782, %v437
  %796 = vrot.lane.b32.xlu0 %v784, 111
  %v797 = vpop.permute.xlu0 %796
  %798 = vrot.lane.b32.xlu0 %v785, 111
  %v799 = vpop.permute.xlu0 %798
  %800 = vrot.lane.b32.xlu0 %v786, 111
  %v801 = vpop.permute.xlu0 %800
  %802 = vrot.lane.b32.xlu0 %v787, 111
  %v803 = vpop.permute.xlu0 %802
  %804 = vrot.lane.b32.xlu0 %v788, 111
  %v805 = vpop.permute.xlu0 %804
  %806 = vrot.lane.b32.xlu0 %v789, 111
  %v807 = vpop.permute.xlu0 %806
  %v808 = vsel %vm678, %v797, %v799
  %v809 = vsel %vm678, %v799, %v801
  %v810 = vsel %vm678, %v801, %v803
  %v811 = vsel %vm678, %v803, %v805
  %v812 = vsel %vm678, %v805, %v807
  %v818 = vadd.f32 %v775, %v808
  %v819 = vadd.f32 %v776, %v809
  %v820 = vadd.f32 %v777, %v810
  %v821 = vadd.f32 %v778, %v811
  %v822 = vadd.f32 %v779, %v812
  %v824 = vlaneseq
  %v825 = vshrl.u32 %v824, 7
  %v826 = vsub.s32 0, %v825
  %v827 = vrot.slane %v25, %v826
  %v828 = vlaneseq
  %v829 = vshrl.u32 %v828, 7
  %v830 = vsub.s32 1, %v829
  %v831 = vrot.slane %v25, %v830
  %v832 = vlaneseq
  %v833 = vshrl.u32 %v832, 7
  %v834 = vsub.s32 2, %v833
  %v835 = vrot.slane %v25, %v834
  %v836 = vlaneseq
  %v837 = vshrl.u32 %v836, 7
  %v838 = vsub.s32 3, %v837
  %v839 = vrot.slane %v25, %v838
  %v840 = vlaneseq
  %v841 = vshrl.u32 %v840, 7
  %v842 = vsub.s32 4, %v841
  %v843 = vrot.slane %v25, %v842
  %v849 = vmul.f32 %v818, %v827
  %v850 = vmul.f32 %v819, %v831
  %v851 = vmul.f32 %v820, %v835
  %v852 = vmul.f32 %v821, %v839
  %v853 = vmul.f32 %v822, %v843
  %vm854 = vcmask 1043456
  %v855 = vsel %vm854, %v849, 0.0
  %v856 = vsel %vm854, %v850, 0.0
  %v857 = vadd.f32 %v855, %v856
  %v858 = vsel %vm854, %v851, 0.0
  %v859 = vadd.f32 %v857, %v858
  %v860 = vsel %vm854, %v852, 0.0
  %v861 = vadd.f32 %v859, %v860
  %v862 = vsel %vm854, %v853, 0.0
  %v863 = vadd.f32 %v861, %v862
  %864 = vadd.xlane.f32.xlu0 %v863
  %v865 = vpop.xlane.xlu0 %864
  %v866 = vmul.f32 %v865, 0.0022222223
  %v867 = vsub.f32 %v818, %v866
  %v868 = vsub.f32 %v819, %v866
  %v869 = vsub.f32 %v820, %v866
  %v870 = vsub.f32 %v821, %v866
  %v871 = vsub.f32 %v822, %v866
  %v872 = vmul.f32 %v867, %v827
  %v873 = vmul.f32 %v868, %v831
  %v874 = vmul.f32 %v869, %v835
  %v875 = vmul.f32 %v870, %v839
  %v876 = vmul.f32 %v871, %v843
  %v877 = vmul.f32 %v872, %v872
  %v878 = vmul.f32 %v873, %v873
  %v879 = vmul.f32 %v874, %v874
  %v880 = vmul.f32 %v875, %v875
  %v881 = vmul.f32 %v876, %v876
  %v882 = vsel %vm854, %v877, 0.0
  %v883 = vsel %vm854, %v878, 0.0
  %v884 = vadd.f32 %v882, %v883
  %v885 = vsel %vm854, %v879, 0.0
  %v886 = vadd.f32 %v884, %v885
  %v887 = vsel %vm854, %v880, 0.0
  %v888 = vadd.f32 %v886, %v887
  %v889 = vsel %vm854, %v881, 0.0
  %v890 = vadd.f32 %v888, %v889
  %891 = vadd.xlane.f32.xlu0 %v890
  %v892 = vpop.xlane.xlu0 %891
  %v893 = vmul.f32 %v892, 0.0022222223
  %v894 = vadd.f32 %v893, 1e-05
  %v895 = vrsqrt.pop %v894
  %v896 = vmul.f32 %v23, %v895
  %v897 = vmul.f32 %v866, %v896
  %899 = vrot.lane.b32.xlu0 %v897, 1
  %v900 = vpop.permute.xlu0 %899
  %v902 = vsub.f32 %v23, %v900
  %904 = vset.pattern.permute.xlu0 16
  %905 = vperm.xlu0 %904, %v896
  %v906 = vpop.permute.xlu0 %905
  %v908 = vmul.f32 %v818, %v906
  %v909 = vmul.f32 %v819, %v906
  %v910 = vmul.f32 %v820, %v906
  %v911 = vmul.f32 %v821, %v906
  %v912 = vmul.f32 %v822, %v906
  %914 = vset.pattern.permute.xlu0 17
  %915 = vperm.xlu0 %914, %v902
  %v916 = vpop.permute.xlu0 %915
  %v918 = vadd.f32 %v908, %v916
  %v919 = vadd.f32 %v909, %v916
  %v920 = vadd.f32 %v910, %v916
  %v921 = vadd.f32 %v911, %v916
  %v922 = vadd.f32 %v912, %v916
  %v923 = vmax.f32 %v918, 0.0
  %v924 = vmax.f32 %v919, 0.0
  %v925 = vmax.f32 %v920, 0.0
  %v926 = vmax.f32 %v921, 0.0
  %v927 = vmax.f32 %v922, 0.0
  %929 = vset.pattern.permute.xlu0 0
  %930 = vperm.xlu0 %929, %v24
  %v931 = vpop.permute.xlu0 %930
  %v933 = vlaneseq
  %v934 = vshrl.u32 %v933, 7
  %v935 = vsub.s32 0, %v934
  %v936 = vrot.slane %v923, %v935
  %v937 = vlaneseq
  %v938 = vshrl.u32 %v937, 7
  %v939 = vsub.s32 0, %v938
  %v940 = vrot.slane %v924, %v939
  %v941 = vlaneseq
  %v942 = vshrl.u32 %v941, 7
  %v943 = vsub.s32 0, %v942
  %v944 = vrot.slane %v925, %v943
  %v945 = vlaneseq
  %v946 = vshrl.u32 %v945, 7
  %v947 = vsub.s32 0, %v946
  %v948 = vrot.slane %v926, %v947
  %v949 = vmul.f32 %v31, %v936
  %v950 = vmul.f32 %v31, %v940
  %v951 = vmul.f32 %v31, %v944
  %v952 = vmul.f32 %v31, %v948
  %v953 = vmul.f32 %v931, %v936
  %v954 = vmul.f32 %v931, %v940
  %v955 = vmul.f32 %v931, %v944
  %v956 = vmul.f32 %v931, %v948
  %v957 = vadd.f32 %v949, 0.0
  %v958 = vadd.f32 %v950, 0.0
  %v959 = vadd.f32 %v951, 0.0
  %v960 = vadd.f32 %v952, 0.0
  %v961 = vadd.f32 %v953, 0.0
  %v962 = vadd.f32 %v954, 0.0
  %v963 = vadd.f32 %v955, 0.0
  %v964 = vadd.f32 %v956, 0.0
  %965 = vset.pattern.permute.xlu0 1
  %966 = vperm.xlu0 %965, %v24
  %v967 = vpop.permute.xlu0 %966
  %v969 = vlaneseq
  %v970 = vshrl.u32 %v969, 7
  %v971 = vsub.s32 1, %v970
  %v972 = vrot.slane %v923, %v971
  %v973 = vlaneseq
  %v974 = vshrl.u32 %v973, 7
  %v975 = vsub.s32 1, %v974
  %v976 = vrot.slane %v924, %v975
  %v977 = vlaneseq
  %v978 = vshrl.u32 %v977, 7
  %v979 = vsub.s32 1, %v978
  %v980 = vrot.slane %v925, %v979
  %v981 = vlaneseq
  %v982 = vshrl.u32 %v981, 7
  %v983 = vsub.s32 1, %v982
  %v984 = vrot.slane %v926, %v983
  %v985 = vmul.f32 %v93, %v972
  %v986 = vmul.f32 %v93, %v976
  %v987 = vmul.f32 %v93, %v980
  %v988 = vmul.f32 %v93, %v984
  %v989 = vmul.f32 %v967, %v972
  %v990 = vmul.f32 %v967, %v976
  %v991 = vmul.f32 %v967, %v980
  %v992 = vmul.f32 %v967, %v984
  %v993 = vadd.f32 %v957, %v985
  %v994 = vadd.f32 %v958, %v986
  %v995 = vadd.f32 %v959, %v987
  %v996 = vadd.f32 %v960, %v988
  %v997 = vadd.f32 %v961, %v989
  %v998 = vadd.f32 %v962, %v990
  %v999 = vadd.f32 %v963, %v991
  %v1000 = vadd.f32 %v964, %v992
  %1001 = vset.pattern.permute.xlu0 2
  %1002 = vperm.xlu0 %1001, %v24
  %v1003 = vpop.permute.xlu0 %1002
  %v1005 = vlaneseq
  %v1006 = vshrl.u32 %v1005, 7
  %v1007 = vsub.s32 2, %v1006
  %v1008 = vrot.slane %v923, %v1007
  %v1009 = vlaneseq
  %v1010 = vshrl.u32 %v1009, 7
  %v1011 = vsub.s32 2, %v1010
  %v1012 = vrot.slane %v924, %v1011
  %v1013 = vlaneseq
  %v1014 = vshrl.u32 %v1013, 7
  %v1015 = vsub.s32 2, %v1014
  %v1016 = vrot.slane %v925, %v1015
  %v1017 = vlaneseq
  %v1018 = vshrl.u32 %v1017, 7
  %v1019 = vsub.s32 2, %v1018
  %v1020 = vrot.slane %v926, %v1019
  %v1021 = vmul.f32 %v152, %v1008
  %v1022 = vmul.f32 %v152, %v1012
  %v1023 = vmul.f32 %v152, %v1016
  %v1024 = vmul.f32 %v152, %v1020
  %v1025 = vmul.f32 %v1003, %v1008
  %v1026 = vmul.f32 %v1003, %v1012
  %v1027 = vmul.f32 %v1003, %v1016
  %v1028 = vmul.f32 %v1003, %v1020
  %v1029 = vadd.f32 %v993, %v1021
  %v1030 = vadd.f32 %v994, %v1022
  %v1031 = vadd.f32 %v995, %v1023
  %v1032 = vadd.f32 %v996, %v1024
  %v1033 = vadd.f32 %v997, %v1025
  %v1034 = vadd.f32 %v998, %v1026
  %v1035 = vadd.f32 %v999, %v1027
  %v1036 = vadd.f32 %v1000, %v1028
  %1037 = vset.pattern.permute.xlu0 3
  %1038 = vperm.xlu0 %1037, %v24
  %v1039 = vpop.permute.xlu0 %1038
  %v1041 = vlaneseq
  %v1042 = vshrl.u32 %v1041, 7
  %v1043 = vsub.s32 3, %v1042
  %v1044 = vrot.slane %v923, %v1043
  %v1045 = vlaneseq
  %v1046 = vshrl.u32 %v1045, 7
  %v1047 = vsub.s32 3, %v1046
  %v1048 = vrot.slane %v924, %v1047
  %v1049 = vlaneseq
  %v1050 = vshrl.u32 %v1049, 7
  %v1051 = vsub.s32 3, %v1050
  %v1052 = vrot.slane %v925, %v1051
  %v1053 = vlaneseq
  %v1054 = vshrl.u32 %v1053, 7
  %v1055 = vsub.s32 3, %v1054
  %v1056 = vrot.slane %v926, %v1055
  %v1057 = vmul.f32 %v211, %v1044
  %v1058 = vmul.f32 %v211, %v1048
  %v1059 = vmul.f32 %v211, %v1052
  %v1060 = vmul.f32 %v211, %v1056
  %v1061 = vmul.f32 %v1039, %v1044
  %v1062 = vmul.f32 %v1039, %v1048
  %v1063 = vmul.f32 %v1039, %v1052
  %v1064 = vmul.f32 %v1039, %v1056
  %v1065 = vadd.f32 %v1029, %v1057
  %v1066 = vadd.f32 %v1030, %v1058
  %v1067 = vadd.f32 %v1031, %v1059
  %v1068 = vadd.f32 %v1032, %v1060
  %v1069 = vadd.f32 %v1033, %v1061
  %v1070 = vadd.f32 %v1034, %v1062
  %v1071 = vadd.f32 %v1035, %v1063
  %v1072 = vadd.f32 %v1036, %v1064
  %1073 = vset.pattern.permute.xlu0 4
  %1074 = vperm.xlu0 %1073, %v24
  %v1075 = vpop.permute.xlu0 %1074
  %v1077 = vlaneseq
  %v1078 = vshrl.u32 %v1077, 7
  %v1079 = vsub.s32 0, %v1078
  %v1080 = vrot.slane %v927, %v1079
  %v1081 = vmul.f32 %v270, %v936
  %v1082 = vmul.f32 %v270, %v940
  %v1083 = vmul.f32 %v270, %v944
  %v1084 = vmul.f32 %v270, %v948
  %v1085 = vmul.f32 %v270, %v1080
  %v1086 = vmul.f32 %v1075, %v936
  %v1087 = vmul.f32 %v1075, %v940
  %v1088 = vmul.f32 %v1075, %v944
  %v1089 = vmul.f32 %v1075, %v948
  %v1090 = vmul.f32 %v1075, %v1080
  %1101 = vrot.lane.b32.xlu0 %v1081, 127
  %v1102 = vpop.permute.xlu0 %1101
  %1103 = vrot.lane.b32.xlu0 %v1082, 127
  %v1104 = vpop.permute.xlu0 %1103
  %1105 = vrot.lane.b32.xlu0 %v1083, 127
  %v1106 = vpop.permute.xlu0 %1105
  %1107 = vrot.lane.b32.xlu0 %v1084, 127
  %v1108 = vpop.permute.xlu0 %1107
  %1109 = vrot.lane.b32.xlu0 %v1085, 127
  %v1110 = vpop.permute.xlu0 %1109
  %1111 = vrot.lane.b32.xlu0 %v1086, 127
  %v1112 = vpop.permute.xlu0 %1111
  %1113 = vrot.lane.b32.xlu0 %v1087, 127
  %v1114 = vpop.permute.xlu0 %1113
  %1115 = vrot.lane.b32.xlu0 %v1088, 127
  %v1116 = vpop.permute.xlu0 %1115
  %1117 = vrot.lane.b32.xlu0 %v1089, 127
  %v1118 = vpop.permute.xlu0 %1117
  %1119 = vrot.lane.b32.xlu0 %v1090, 127
  %v1120 = vpop.permute.xlu0 %1119
  %v1121 = vsel %vm305, %v1102, %v1104
  %v1122 = vsel %vm305, %v1104, %v1106
  %v1123 = vsel %vm305, %v1106, %v1108
  %v1124 = vsel %vm305, %v1108, %v1110
  %v1125 = vsel %vm305, %v1112, %v1114
  %v1126 = vsel %vm305, %v1114, %v1116
  %v1127 = vsel %vm305, %v1116, %v1118
  %v1128 = vsel %vm305, %v1118, %v1120
  %v1137 = vadd.f32 %v1065, %v1121
  %v1138 = vadd.f32 %v1066, %v1122
  %v1139 = vadd.f32 %v1067, %v1123
  %v1140 = vadd.f32 %v1068, %v1124
  %v1141 = vadd.f32 %v1069, %v1125
  %v1142 = vadd.f32 %v1070, %v1126
  %v1143 = vadd.f32 %v1071, %v1127
  %v1144 = vadd.f32 %v1072, %v1128
  %1145 = vset.pattern.permute.xlu0 5
  %1146 = vperm.xlu0 %1145, %v24
  %v1147 = vpop.permute.xlu0 %1146
  %v1149 = vlaneseq
  %v1150 = vshrl.u32 %v1149, 7
  %v1151 = vsub.s32 1, %v1150
  %v1152 = vrot.slane %v927, %v1151
  %v1153 = vmul.f32 %v323, %v972
  %v1154 = vmul.f32 %v323, %v976
  %v1155 = vmul.f32 %v323, %v980
  %v1156 = vmul.f32 %v323, %v984
  %v1157 = vmul.f32 %v323, %v1152
  %v1158 = vmul.f32 %v1147, %v972
  %v1159 = vmul.f32 %v1147, %v976
  %v1160 = vmul.f32 %v1147, %v980
  %v1161 = vmul.f32 %v1147, %v984
  %v1162 = vmul.f32 %v1147, %v1152
  %1173 = vrot.lane.b32.xlu0 %v1153, 127
  %v1174 = vpop.permute.xlu0 %1173
  %1175 = vrot.lane.b32.xlu0 %v1154, 127
  %v1176 = vpop.permute.xlu0 %1175
  %1177 = vrot.lane.b32.xlu0 %v1155, 127
  %v1178 = vpop.permute.xlu0 %1177
  %1179 = vrot.lane.b32.xlu0 %v1156, 127
  %v1180 = vpop.permute.xlu0 %1179
  %1181 = vrot.lane.b32.xlu0 %v1157, 127
  %v1182 = vpop.permute.xlu0 %1181
  %1183 = vrot.lane.b32.xlu0 %v1158, 127
  %v1184 = vpop.permute.xlu0 %1183
  %1185 = vrot.lane.b32.xlu0 %v1159, 127
  %v1186 = vpop.permute.xlu0 %1185
  %1187 = vrot.lane.b32.xlu0 %v1160, 127
  %v1188 = vpop.permute.xlu0 %1187
  %1189 = vrot.lane.b32.xlu0 %v1161, 127
  %v1190 = vpop.permute.xlu0 %1189
  %1191 = vrot.lane.b32.xlu0 %v1162, 127
  %v1192 = vpop.permute.xlu0 %1191
  %v1193 = vsel %vm305, %v1174, %v1176
  %v1194 = vsel %vm305, %v1176, %v1178
  %v1195 = vsel %vm305, %v1178, %v1180
  %v1196 = vsel %vm305, %v1180, %v1182
  %v1197 = vsel %vm305, %v1184, %v1186
  %v1198 = vsel %vm305, %v1186, %v1188
  %v1199 = vsel %vm305, %v1188, %v1190
  %v1200 = vsel %vm305, %v1190, %v1192
  %v1209 = vadd.f32 %v1137, %v1193
  %v1210 = vadd.f32 %v1138, %v1194
  %v1211 = vadd.f32 %v1139, %v1195
  %v1212 = vadd.f32 %v1140, %v1196
  %v1213 = vadd.f32 %v1141, %v1197
  %v1214 = vadd.f32 %v1142, %v1198
  %v1215 = vadd.f32 %v1143, %v1199
  %v1216 = vadd.f32 %v1144, %v1200
  %1217 = vset.pattern.permute.xlu0 6
  %1218 = vperm.xlu0 %1217, %v24
  %v1219 = vpop.permute.xlu0 %1218
  %v1221 = vlaneseq
  %v1222 = vshrl.u32 %v1221, 7
  %v1223 = vsub.s32 2, %v1222
  %v1224 = vrot.slane %v927, %v1223
  %v1225 = vmul.f32 %v375, %v1008
  %v1226 = vmul.f32 %v375, %v1012
  %v1227 = vmul.f32 %v375, %v1016
  %v1228 = vmul.f32 %v375, %v1020
  %v1229 = vmul.f32 %v375, %v1224
  %v1230 = vmul.f32 %v1219, %v1008
  %v1231 = vmul.f32 %v1219, %v1012
  %v1232 = vmul.f32 %v1219, %v1016
  %v1233 = vmul.f32 %v1219, %v1020
  %v1234 = vmul.f32 %v1219, %v1224
  %1245 = vrot.lane.b32.xlu0 %v1225, 127
  %v1246 = vpop.permute.xlu0 %1245
  %1247 = vrot.lane.b32.xlu0 %v1226, 127
  %v1248 = vpop.permute.xlu0 %1247
  %1249 = vrot.lane.b32.xlu0 %v1227, 127
  %v1250 = vpop.permute.xlu0 %1249
  %1251 = vrot.lane.b32.xlu0 %v1228, 127
  %v1252 = vpop.permute.xlu0 %1251
  %1253 = vrot.lane.b32.xlu0 %v1229, 127
  %v1254 = vpop.permute.xlu0 %1253
  %1255 = vrot.lane.b32.xlu0 %v1230, 127
  %v1256 = vpop.permute.xlu0 %1255
  %1257 = vrot.lane.b32.xlu0 %v1231, 127
  %v1258 = vpop.permute.xlu0 %1257
  %1259 = vrot.lane.b32.xlu0 %v1232, 127
  %v1260 = vpop.permute.xlu0 %1259
  %1261 = vrot.lane.b32.xlu0 %v1233, 127
  %v1262 = vpop.permute.xlu0 %1261
  %1263 = vrot.lane.b32.xlu0 %v1234, 127
  %v1264 = vpop.permute.xlu0 %1263
  %v1265 = vsel %vm305, %v1246, %v1248
  %v1266 = vsel %vm305, %v1248, %v1250
  %v1267 = vsel %vm305, %v1250, %v1252
  %v1268 = vsel %vm305, %v1252, %v1254
  %v1269 = vsel %vm305, %v1256, %v1258
  %v1270 = vsel %vm305, %v1258, %v1260
  %v1271 = vsel %vm305, %v1260, %v1262
  %v1272 = vsel %vm305, %v1262, %v1264
  %v1281 = vadd.f32 %v1209, %v1265
  %v1282 = vadd.f32 %v1210, %v1266
  %v1283 = vadd.f32 %v1211, %v1267
  %v1284 = vadd.f32 %v1212, %v1268
  %v1285 = vadd.f32 %v1213, %v1269
  %v1286 = vadd.f32 %v1214, %v1270
  %v1287 = vadd.f32 %v1215, %v1271
  %v1288 = vadd.f32 %v1216, %v1272
  %1289 = vset.pattern.permute.xlu0 7
  %1290 = vperm.xlu0 %1289, %v24
  %v1291 = vpop.permute.xlu0 %1290
  %v1293 = vlaneseq
  %v1294 = vshrl.u32 %v1293, 7
  %v1295 = vsub.s32 3, %v1294
  %v1296 = vrot.slane %v927, %v1295
  %v1297 = vmul.f32 %v427, %v1044
  %v1298 = vmul.f32 %v427, %v1048
  %v1299 = vmul.f32 %v427, %v1052
  %v1300 = vmul.f32 %v427, %v1056
  %v1301 = vmul.f32 %v427, %v1296
  %v1302 = vmul.f32 %v1291, %v1044
  %v1303 = vmul.f32 %v1291, %v1048
  %v1304 = vmul.f32 %v1291, %v1052
  %v1305 = vmul.f32 %v1291, %v1056
  %v1306 = vmul.f32 %v1291, %v1296
  %1317 = vrot.lane.b32.xlu0 %v1297, 127
  %v1318 = vpop.permute.xlu0 %1317
  %1319 = vrot.lane.b32.xlu0 %v1298, 127
  %v1320 = vpop.permute.xlu0 %1319
  %1321 = vrot.lane.b32.xlu0 %v1299, 127
  %v1322 = vpop.permute.xlu0 %1321
  %1323 = vrot.lane.b32.xlu0 %v1300, 127
  %v1324 = vpop.permute.xlu0 %1323
  %1325 = vrot.lane.b32.xlu0 %v1301, 127
  %v1326 = vpop.permute.xlu0 %1325
  %1327 = vrot.lane.b32.xlu0 %v1302, 127
  %v1328 = vpop.permute.xlu0 %1327
  %1329 = vrot.lane.b32.xlu0 %v1303, 127
  %v1330 = vpop.permute.xlu0 %1329
  %1331 = vrot.lane.b32.xlu0 %v1304, 127
  %v1332 = vpop.permute.xlu0 %1331
  %1333 = vrot.lane.b32.xlu0 %v1305, 127
  %v1334 = vpop.permute.xlu0 %1333
  %1335 = vrot.lane.b32.xlu0 %v1306, 127
  %v1336 = vpop.permute.xlu0 %1335
  %v1337 = vsel %vm305, %v1318, %v1320
  %v1338 = vsel %vm305, %v1320, %v1322
  %v1339 = vsel %vm305, %v1322, %v1324
  %v1340 = vsel %vm305, %v1324, %v1326
  %v1341 = vsel %vm305, %v1328, %v1330
  %v1342 = vsel %vm305, %v1330, %v1332
  %v1343 = vsel %vm305, %v1332, %v1334
  %v1344 = vsel %vm305, %v1334, %v1336
  %v1353 = vadd.f32 %v1281, %v1337
  %v1354 = vadd.f32 %v1282, %v1338
  %v1355 = vadd.f32 %v1283, %v1339
  %v1356 = vadd.f32 %v1284, %v1340
  %v1357 = vadd.f32 %v1285, %v1341
  %v1358 = vadd.f32 %v1286, %v1342
  %v1359 = vadd.f32 %v1287, %v1343
  %v1360 = vadd.f32 %v1288, %v1344
  %1361 = vset.pattern.permute.xlu0 8
  %1362 = vperm.xlu0 %1361, %v24
  %v1363 = vpop.permute.xlu0 %1362
  %v1365 = vmul.f32 %v479, %v936
  %v1366 = vmul.f32 %v479, %v940
  %v1367 = vmul.f32 %v479, %v944
  %v1368 = vmul.f32 %v479, %v948
  %v1369 = vmul.f32 %v479, %v1080
  %v1370 = vmul.f32 %v1363, %v936
  %v1371 = vmul.f32 %v1363, %v940
  %v1372 = vmul.f32 %v1363, %v944
  %v1373 = vmul.f32 %v1363, %v948
  %v1374 = vmul.f32 %v1363, %v1080
  %1385 = vrot.lane.b32.xlu0 %v1365, 112
  %v1386 = vpop.permute.xlu0 %1385
  %1387 = vrot.lane.b32.xlu0 %v1366, 112
  %v1388 = vpop.permute.xlu0 %1387
  %1389 = vrot.lane.b32.xlu0 %v1367, 112
  %v1390 = vpop.permute.xlu0 %1389
  %1391 = vrot.lane.b32.xlu0 %v1368, 112
  %v1392 = vpop.permute.xlu0 %1391
  %1393 = vrot.lane.b32.xlu0 %v1369, 112
  %v1394 = vpop.permute.xlu0 %1393
  %1395 = vrot.lane.b32.xlu0 %v1370, 112
  %v1396 = vpop.permute.xlu0 %1395
  %1397 = vrot.lane.b32.xlu0 %v1371, 112
  %v1398 = vpop.permute.xlu0 %1397
  %1399 = vrot.lane.b32.xlu0 %v1372, 112
  %v1400 = vpop.permute.xlu0 %1399
  %1401 = vrot.lane.b32.xlu0 %v1373, 112
  %v1402 = vpop.permute.xlu0 %1401
  %1403 = vrot.lane.b32.xlu0 %v1374, 112
  %v1404 = vpop.permute.xlu0 %1403
  %v1405 = vsel %vm505, %v1386, %v1388
  %v1406 = vsel %vm505, %v1388, %v1390
  %v1407 = vsel %vm505, %v1390, %v1392
  %v1408 = vsel %vm505, %v1392, %v1394
  %v1409 = vsel %vm505, %v1396, %v1398
  %v1410 = vsel %vm505, %v1398, %v1400
  %v1411 = vsel %vm505, %v1400, %v1402
  %v1412 = vsel %vm505, %v1402, %v1404
  %v1421 = vadd.f32 %v1353, %v1405
  %v1422 = vadd.f32 %v1354, %v1406
  %v1423 = vadd.f32 %v1355, %v1407
  %v1424 = vadd.f32 %v1356, %v1408
  %v1425 = vadd.f32 %v1357, %v1409
  %v1426 = vadd.f32 %v1358, %v1410
  %v1427 = vadd.f32 %v1359, %v1411
  %v1428 = vadd.f32 %v1360, %v1412
  %1429 = vset.pattern.permute.xlu0 9
  %1430 = vperm.xlu0 %1429, %v24
  %v1431 = vpop.permute.xlu0 %1430
  %v1433 = vmul.f32 %v523, %v972
  %v1434 = vmul.f32 %v523, %v976
  %v1435 = vmul.f32 %v523, %v980
  %v1436 = vmul.f32 %v523, %v984
  %v1437 = vmul.f32 %v523, %v1152
  %v1438 = vmul.f32 %v1431, %v972
  %v1439 = vmul.f32 %v1431, %v976
  %v1440 = vmul.f32 %v1431, %v980
  %v1441 = vmul.f32 %v1431, %v984
  %v1442 = vmul.f32 %v1431, %v1152
  %1453 = vrot.lane.b32.xlu0 %v1433, 112
  %v1454 = vpop.permute.xlu0 %1453
  %1455 = vrot.lane.b32.xlu0 %v1434, 112
  %v1456 = vpop.permute.xlu0 %1455
  %1457 = vrot.lane.b32.xlu0 %v1435, 112
  %v1458 = vpop.permute.xlu0 %1457
  %1459 = vrot.lane.b32.xlu0 %v1436, 112
  %v1460 = vpop.permute.xlu0 %1459
  %1461 = vrot.lane.b32.xlu0 %v1437, 112
  %v1462 = vpop.permute.xlu0 %1461
  %1463 = vrot.lane.b32.xlu0 %v1438, 112
  %v1464 = vpop.permute.xlu0 %1463
  %1465 = vrot.lane.b32.xlu0 %v1439, 112
  %v1466 = vpop.permute.xlu0 %1465
  %1467 = vrot.lane.b32.xlu0 %v1440, 112
  %v1468 = vpop.permute.xlu0 %1467
  %1469 = vrot.lane.b32.xlu0 %v1441, 112
  %v1470 = vpop.permute.xlu0 %1469
  %1471 = vrot.lane.b32.xlu0 %v1442, 112
  %v1472 = vpop.permute.xlu0 %1471
  %v1473 = vsel %vm505, %v1454, %v1456
  %v1474 = vsel %vm505, %v1456, %v1458
  %v1475 = vsel %vm505, %v1458, %v1460
  %v1476 = vsel %vm505, %v1460, %v1462
  %v1477 = vsel %vm505, %v1464, %v1466
  %v1478 = vsel %vm505, %v1466, %v1468
  %v1479 = vsel %vm505, %v1468, %v1470
  %v1480 = vsel %vm505, %v1470, %v1472
  %v1489 = vadd.f32 %v1421, %v1473
  %v1490 = vadd.f32 %v1422, %v1474
  %v1491 = vadd.f32 %v1423, %v1475
  %v1492 = vadd.f32 %v1424, %v1476
  %v1493 = vadd.f32 %v1425, %v1477
  %v1494 = vadd.f32 %v1426, %v1478
  %v1495 = vadd.f32 %v1427, %v1479
  %v1496 = vadd.f32 %v1428, %v1480
  %1497 = vset.pattern.permute.xlu0 10
  %1498 = vperm.xlu0 %1497, %v24
  %v1499 = vpop.permute.xlu0 %1498
  %v1501 = vmul.f32 %v566, %v1008
  %v1502 = vmul.f32 %v566, %v1012
  %v1503 = vmul.f32 %v566, %v1016
  %v1504 = vmul.f32 %v566, %v1020
  %v1505 = vmul.f32 %v566, %v1224
  %v1506 = vmul.f32 %v1499, %v1008
  %v1507 = vmul.f32 %v1499, %v1012
  %v1508 = vmul.f32 %v1499, %v1016
  %v1509 = vmul.f32 %v1499, %v1020
  %v1510 = vmul.f32 %v1499, %v1224
  %1521 = vrot.lane.b32.xlu0 %v1501, 112
  %v1522 = vpop.permute.xlu0 %1521
  %1523 = vrot.lane.b32.xlu0 %v1502, 112
  %v1524 = vpop.permute.xlu0 %1523
  %1525 = vrot.lane.b32.xlu0 %v1503, 112
  %v1526 = vpop.permute.xlu0 %1525
  %1527 = vrot.lane.b32.xlu0 %v1504, 112
  %v1528 = vpop.permute.xlu0 %1527
  %1529 = vrot.lane.b32.xlu0 %v1505, 112
  %v1530 = vpop.permute.xlu0 %1529
  %1531 = vrot.lane.b32.xlu0 %v1506, 112
  %v1532 = vpop.permute.xlu0 %1531
  %1533 = vrot.lane.b32.xlu0 %v1507, 112
  %v1534 = vpop.permute.xlu0 %1533
  %1535 = vrot.lane.b32.xlu0 %v1508, 112
  %v1536 = vpop.permute.xlu0 %1535
  %1537 = vrot.lane.b32.xlu0 %v1509, 112
  %v1538 = vpop.permute.xlu0 %1537
  %1539 = vrot.lane.b32.xlu0 %v1510, 112
  %v1540 = vpop.permute.xlu0 %1539
  %v1541 = vsel %vm505, %v1522, %v1524
  %v1542 = vsel %vm505, %v1524, %v1526
  %v1543 = vsel %vm505, %v1526, %v1528
  %v1544 = vsel %vm505, %v1528, %v1530
  %v1545 = vsel %vm505, %v1532, %v1534
  %v1546 = vsel %vm505, %v1534, %v1536
  %v1547 = vsel %vm505, %v1536, %v1538
  %v1548 = vsel %vm505, %v1538, %v1540
  %v1557 = vadd.f32 %v1489, %v1541
  %v1558 = vadd.f32 %v1490, %v1542
  %v1559 = vadd.f32 %v1491, %v1543
  %v1560 = vadd.f32 %v1492, %v1544
  %v1561 = vadd.f32 %v1493, %v1545
  %v1562 = vadd.f32 %v1494, %v1546
  %v1563 = vadd.f32 %v1495, %v1547
  %v1564 = vadd.f32 %v1496, %v1548
  %1565 = vset.pattern.permute.xlu0 11
  %1566 = vperm.xlu0 %1565, %v24
  %v1567 = vpop.permute.xlu0 %1566
  %v1569 = vmul.f32 %v609, %v1044
  %v1570 = vmul.f32 %v609, %v1048
  %v1571 = vmul.f32 %v609, %v1052
  %v1572 = vmul.f32 %v609, %v1056
  %v1573 = vmul.f32 %v609, %v1296
  %v1574 = vmul.f32 %v1567, %v1044
  %v1575 = vmul.f32 %v1567, %v1048
  %v1576 = vmul.f32 %v1567, %v1052
  %v1577 = vmul.f32 %v1567, %v1056
  %v1578 = vmul.f32 %v1567, %v1296
  %1589 = vrot.lane.b32.xlu0 %v1569, 112
  %v1590 = vpop.permute.xlu0 %1589
  %1591 = vrot.lane.b32.xlu0 %v1570, 112
  %v1592 = vpop.permute.xlu0 %1591
  %1593 = vrot.lane.b32.xlu0 %v1571, 112
  %v1594 = vpop.permute.xlu0 %1593
  %1595 = vrot.lane.b32.xlu0 %v1572, 112
  %v1596 = vpop.permute.xlu0 %1595
  %1597 = vrot.lane.b32.xlu0 %v1573, 112
  %v1598 = vpop.permute.xlu0 %1597
  %1599 = vrot.lane.b32.xlu0 %v1574, 112
  %v1600 = vpop.permute.xlu0 %1599
  %1601 = vrot.lane.b32.xlu0 %v1575, 112
  %v1602 = vpop.permute.xlu0 %1601
  %1603 = vrot.lane.b32.xlu0 %v1576, 112
  %v1604 = vpop.permute.xlu0 %1603
  %1605 = vrot.lane.b32.xlu0 %v1577, 112
  %v1606 = vpop.permute.xlu0 %1605
  %1607 = vrot.lane.b32.xlu0 %v1578, 112
  %v1608 = vpop.permute.xlu0 %1607
  %v1609 = vsel %vm505, %v1590, %v1592
  %v1610 = vsel %vm505, %v1592, %v1594
  %v1611 = vsel %vm505, %v1594, %v1596
  %v1612 = vsel %vm505, %v1596, %v1598
  %v1613 = vsel %vm505, %v1600, %v1602
  %v1614 = vsel %vm505, %v1602, %v1604
  %v1615 = vsel %vm505, %v1604, %v1606
  %v1616 = vsel %vm505, %v1606, %v1608
  %v1625 = vadd.f32 %v1557, %v1609
  %v1626 = vadd.f32 %v1558, %v1610
  %v1627 = vadd.f32 %v1559, %v1611
  %v1628 = vadd.f32 %v1560, %v1612
  %v1629 = vadd.f32 %v1561, %v1613
  %v1630 = vadd.f32 %v1562, %v1614
  %v1631 = vadd.f32 %v1563, %v1615
  %v1632 = vadd.f32 %v1564, %v1616
  %1633 = vset.pattern.permute.xlu0 12
  %1634 = vperm.xlu0 %1633, %v24
  %v1635 = vpop.permute.xlu0 %1634
  %v1637 = vmul.f32 %v652, %v936
  %v1638 = vmul.f32 %v652, %v940
  %v1639 = vmul.f32 %v652, %v944
  %v1640 = vmul.f32 %v652, %v948
  %v1641 = vmul.f32 %v652, %v1080
  %v1642 = vmul.f32 %v1635, %v936
  %v1643 = vmul.f32 %v1635, %v940
  %v1644 = vmul.f32 %v1635, %v944
  %v1645 = vmul.f32 %v1635, %v948
  %v1646 = vmul.f32 %v1635, %v1080
  %1657 = vrot.lane.b32.xlu0 %v1637, 111
  %v1658 = vpop.permute.xlu0 %1657
  %1659 = vrot.lane.b32.xlu0 %v1638, 111
  %v1660 = vpop.permute.xlu0 %1659
  %1661 = vrot.lane.b32.xlu0 %v1639, 111
  %v1662 = vpop.permute.xlu0 %1661
  %1663 = vrot.lane.b32.xlu0 %v1640, 111
  %v1664 = vpop.permute.xlu0 %1663
  %1665 = vrot.lane.b32.xlu0 %v1641, 111
  %v1666 = vpop.permute.xlu0 %1665
  %1667 = vrot.lane.b32.xlu0 %v1642, 111
  %v1668 = vpop.permute.xlu0 %1667
  %1669 = vrot.lane.b32.xlu0 %v1643, 111
  %v1670 = vpop.permute.xlu0 %1669
  %1671 = vrot.lane.b32.xlu0 %v1644, 111
  %v1672 = vpop.permute.xlu0 %1671
  %1673 = vrot.lane.b32.xlu0 %v1645, 111
  %v1674 = vpop.permute.xlu0 %1673
  %1675 = vrot.lane.b32.xlu0 %v1646, 111
  %v1676 = vpop.permute.xlu0 %1675
  %v1677 = vsel %vm678, %v1658, %v1660
  %v1678 = vsel %vm678, %v1660, %v1662
  %v1679 = vsel %vm678, %v1662, %v1664
  %v1680 = vsel %vm678, %v1664, %v1666
  %v1681 = vsel %vm678, %v1668, %v1670
  %v1682 = vsel %vm678, %v1670, %v1672
  %v1683 = vsel %vm678, %v1672, %v1674
  %v1684 = vsel %vm678, %v1674, %v1676
  %v1693 = vadd.f32 %v1625, %v1677
  %v1694 = vadd.f32 %v1626, %v1678
  %v1695 = vadd.f32 %v1627, %v1679
  %v1696 = vadd.f32 %v1628, %v1680
  %v1697 = vadd.f32 %v1629, %v1681
  %v1698 = vadd.f32 %v1630, %v1682
  %v1699 = vadd.f32 %v1631, %v1683
  %v1700 = vadd.f32 %v1632, %v1684
  %1701 = vset.pattern.permute.xlu0 13
  %1702 = vperm.xlu0 %1701, %v24
  %v1703 = vpop.permute.xlu0 %1702
  %v1705 = vmul.f32 %v696, %v972
  %v1706 = vmul.f32 %v696, %v976
  %v1707 = vmul.f32 %v696, %v980
  %v1708 = vmul.f32 %v696, %v984
  %v1709 = vmul.f32 %v696, %v1152
  %v1710 = vmul.f32 %v1703, %v972
  %v1711 = vmul.f32 %v1703, %v976
  %v1712 = vmul.f32 %v1703, %v980
  %v1713 = vmul.f32 %v1703, %v984
  %v1714 = vmul.f32 %v1703, %v1152
  %1725 = vrot.lane.b32.xlu0 %v1705, 111
  %v1726 = vpop.permute.xlu0 %1725
  %1727 = vrot.lane.b32.xlu0 %v1706, 111
  %v1728 = vpop.permute.xlu0 %1727
  %1729 = vrot.lane.b32.xlu0 %v1707, 111
  %v1730 = vpop.permute.xlu0 %1729
  %1731 = vrot.lane.b32.xlu0 %v1708, 111
  %v1732 = vpop.permute.xlu0 %1731
  %1733 = vrot.lane.b32.xlu0 %v1709, 111
  %v1734 = vpop.permute.xlu0 %1733
  %1735 = vrot.lane.b32.xlu0 %v1710, 111
  %v1736 = vpop.permute.xlu0 %1735
  %1737 = vrot.lane.b32.xlu0 %v1711, 111
  %v1738 = vpop.permute.xlu0 %1737
  %1739 = vrot.lane.b32.xlu0 %v1712, 111
  %v1740 = vpop.permute.xlu0 %1739
  %1741 = vrot.lane.b32.xlu0 %v1713, 111
  %v1742 = vpop.permute.xlu0 %1741
  %1743 = vrot.lane.b32.xlu0 %v1714, 111
  %v1744 = vpop.permute.xlu0 %1743
  %v1745 = vsel %vm678, %v1726, %v1728
  %v1746 = vsel %vm678, %v1728, %v1730
  %v1747 = vsel %vm678, %v1730, %v1732
  %v1748 = vsel %vm678, %v1732, %v1734
  %v1749 = vsel %vm678, %v1736, %v1738
  %v1750 = vsel %vm678, %v1738, %v1740
  %v1751 = vsel %vm678, %v1740, %v1742
  %v1752 = vsel %vm678, %v1742, %v1744
  %v1761 = vadd.f32 %v1693, %v1745
  %v1762 = vadd.f32 %v1694, %v1746
  %v1763 = vadd.f32 %v1695, %v1747
  %v1764 = vadd.f32 %v1696, %v1748
  %v1765 = vadd.f32 %v1697, %v1749
  %v1766 = vadd.f32 %v1698, %v1750
  %v1767 = vadd.f32 %v1699, %v1751
  %v1768 = vadd.f32 %v1700, %v1752
  %1769 = vset.pattern.permute.xlu0 14
  %1770 = vperm.xlu0 %1769, %v24
  %v1771 = vpop.permute.xlu0 %1770
  %v1773 = vmul.f32 %v739, %v1008
  %v1774 = vmul.f32 %v739, %v1012
  %v1775 = vmul.f32 %v739, %v1016
  %v1776 = vmul.f32 %v739, %v1020
  %v1777 = vmul.f32 %v739, %v1224
  %v1778 = vmul.f32 %v1771, %v1008
  %v1779 = vmul.f32 %v1771, %v1012
  %v1780 = vmul.f32 %v1771, %v1016
  %v1781 = vmul.f32 %v1771, %v1020
  %v1782 = vmul.f32 %v1771, %v1224
  %1793 = vrot.lane.b32.xlu0 %v1773, 111
  %v1794 = vpop.permute.xlu0 %1793
  %1795 = vrot.lane.b32.xlu0 %v1774, 111
  %v1796 = vpop.permute.xlu0 %1795
  %1797 = vrot.lane.b32.xlu0 %v1775, 111
  %v1798 = vpop.permute.xlu0 %1797
  %1799 = vrot.lane.b32.xlu0 %v1776, 111
  %v1800 = vpop.permute.xlu0 %1799
  %1801 = vrot.lane.b32.xlu0 %v1777, 111
  %v1802 = vpop.permute.xlu0 %1801
  %1803 = vrot.lane.b32.xlu0 %v1778, 111
  %v1804 = vpop.permute.xlu0 %1803
  %1805 = vrot.lane.b32.xlu0 %v1779, 111
  %v1806 = vpop.permute.xlu0 %1805
  %1807 = vrot.lane.b32.xlu0 %v1780, 111
  %v1808 = vpop.permute.xlu0 %1807
  %1809 = vrot.lane.b32.xlu0 %v1781, 111
  %v1810 = vpop.permute.xlu0 %1809
  %1811 = vrot.lane.b32.xlu0 %v1782, 111
  %v1812 = vpop.permute.xlu0 %1811
  %v1813 = vsel %vm678, %v1794, %v1796
  %v1814 = vsel %vm678, %v1796, %v1798
  %v1815 = vsel %vm678, %v1798, %v1800
  %v1816 = vsel %vm678, %v1800, %v1802
  %v1817 = vsel %vm678, %v1804, %v1806
  %v1818 = vsel %vm678, %v1806, %v1808
  %v1819 = vsel %vm678, %v1808, %v1810
  %v1820 = vsel %vm678, %v1810, %v1812
  %v1829 = vadd.f32 %v1761, %v1813
  %v1830 = vadd.f32 %v1762, %v1814
  %v1831 = vadd.f32 %v1763, %v1815
  %v1832 = vadd.f32 %v1764, %v1816
  %v1833 = vadd.f32 %v1765, %v1817
  %v1834 = vadd.f32 %v1766, %v1818
  %v1835 = vadd.f32 %v1767, %v1819
  %v1836 = vadd.f32 %v1768, %v1820
  %1837 = vset.pattern.permute.xlu0 15
  %1838 = vperm.xlu0 %1837, %v24
  %v1839 = vpop.permute.xlu0 %1838
  %v1841 = vmul.f32 %v782, %v1044
  %v1842 = vmul.f32 %v782, %v1048
  %v1843 = vmul.f32 %v782, %v1052
  %v1844 = vmul.f32 %v782, %v1056
  %v1845 = vmul.f32 %v782, %v1296
  %v1846 = vmul.f32 %v1839, %v1044
  %v1847 = vmul.f32 %v1839, %v1048
  %v1848 = vmul.f32 %v1839, %v1052
  %v1849 = vmul.f32 %v1839, %v1056
  %v1850 = vmul.f32 %v1839, %v1296
  %1861 = vrot.lane.b32.xlu0 %v1841, 111
  %v1862 = vpop.permute.xlu0 %1861
  %1863 = vrot.lane.b32.xlu0 %v1842, 111
  %v1864 = vpop.permute.xlu0 %1863
  %1865 = vrot.lane.b32.xlu0 %v1843, 111
  %v1866 = vpop.permute.xlu0 %1865
  %1867 = vrot.lane.b32.xlu0 %v1844, 111
  %v1868 = vpop.permute.xlu0 %1867
  %1869 = vrot.lane.b32.xlu0 %v1845, 111
  %v1870 = vpop.permute.xlu0 %1869
  %1871 = vrot.lane.b32.xlu0 %v1846, 111
  %v1872 = vpop.permute.xlu0 %1871
  %1873 = vrot.lane.b32.xlu0 %v1847, 111
  %v1874 = vpop.permute.xlu0 %1873
  %1875 = vrot.lane.b32.xlu0 %v1848, 111
  %v1876 = vpop.permute.xlu0 %1875
  %1877 = vrot.lane.b32.xlu0 %v1849, 111
  %v1878 = vpop.permute.xlu0 %1877
  %1879 = vrot.lane.b32.xlu0 %v1850, 111
  %v1880 = vpop.permute.xlu0 %1879
  %v1881 = vsel %vm678, %v1862, %v1864
  %v1882 = vsel %vm678, %v1864, %v1866
  %v1883 = vsel %vm678, %v1866, %v1868
  %v1884 = vsel %vm678, %v1868, %v1870
  %v1885 = vsel %vm678, %v1872, %v1874
  %v1886 = vsel %vm678, %v1874, %v1876
  %v1887 = vsel %vm678, %v1876, %v1878
  %v1888 = vsel %vm678, %v1878, %v1880
  %v1897 = vadd.f32 %v1829, %v1881
  %v1898 = vadd.f32 %v1830, %v1882
  %v1899 = vadd.f32 %v1831, %v1883
  %v1900 = vadd.f32 %v1832, %v1884
  %v1901 = vadd.f32 %v1833, %v1885
  %v1902 = vadd.f32 %v1834, %v1886
  %v1903 = vadd.f32 %v1835, %v1887
  %v1904 = vadd.f32 %v1836, %v1888
  %v1906 = vlaneseq
  %v1907 = vshrl.u32 %v1906, 7
  %v1908 = vsub.s32 0, %v1907
  %v1909 = vrot.slane %v27, %v1908
  %v1910 = vlaneseq
  %v1911 = vshrl.u32 %v1910, 7
  %v1912 = vsub.s32 1, %v1911
  %v1913 = vrot.slane %v27, %v1912
  %v1914 = vlaneseq
  %v1915 = vshrl.u32 %v1914, 7
  %v1916 = vsub.s32 2, %v1915
  %v1917 = vrot.slane %v27, %v1916
  %v1918 = vlaneseq
  %v1919 = vshrl.u32 %v1918, 7
  %v1920 = vsub.s32 3, %v1919
  %v1921 = vrot.slane %v27, %v1920
  %v1926 = vmul.f32 %v1897, %v1909
  %v1927 = vmul.f32 %v1898, %v1913
  %v1928 = vmul.f32 %v1899, %v1917
  %v1929 = vmul.f32 %v1900, %v1921
  %v1930 = vmul.f32 %v1901, %v1909
  %v1931 = vmul.f32 %v1902, %v1913
  %v1932 = vmul.f32 %v1903, %v1917
  %v1933 = vmul.f32 %v1904, %v1921
  %vm1934 = vcmask 1047556
  %v1935 = vsel %vm1934, %v1926, 0.0
  %v1936 = vsel %vm1934, %v1927, 0.0
  %v1937 = vadd.f32 %v1935, %v1936
  %v1938 = vsel %vm1934, %v1928, 0.0
  %v1939 = vadd.f32 %v1937, %v1938
  %v1940 = vsel %vm1934, %v1929, 0.0
  %v1941 = vadd.f32 %v1939, %v1940
  %1942 = vadd.xlane.f32.xlu0 %v1941
  %v1943 = vpop.xlane.xlu0 %1942
  %v1944 = vsel %vm854, %v1930, 0.0
  %v1945 = vsel %vm854, %v1931, 0.0
  %v1946 = vadd.f32 %v1944, %v1945
  %v1947 = vsel %vm854, %v1932, 0.0
  %v1948 = vadd.f32 %v1946, %v1947
  %v1949 = vsel %vm854, %v1933, 0.0
  %v1950 = vadd.f32 %v1948, %v1949
  %1951 = vadd.xlane.f32.xlu0 %v1950
  %v1952 = vpop.xlane.xlu0 %1951
  %v1953 = vmul.f32 %v1943, 0.0025510204
  %v1954 = vmul.f32 %v1952, 0.0025510204
  %v1955 = vsub.f32 %v1897, %v1953
  %v1956 = vsub.f32 %v1898, %v1953
  %v1957 = vsub.f32 %v1899, %v1953
  %v1958 = vsub.f32 %v1900, %v1953
  %v1959 = vsub.f32 %v1901, %v1954
  %v1960 = vsub.f32 %v1902, %v1954
  %v1961 = vsub.f32 %v1903, %v1954
  %v1962 = vsub.f32 %v1904, %v1954
  %v1963 = vmul.f32 %v1955, %v1909
  %v1964 = vmul.f32 %v1956, %v1913
  %v1965 = vmul.f32 %v1957, %v1917
  %v1966 = vmul.f32 %v1958, %v1921
  %v1967 = vmul.f32 %v1959, %v1909
  %v1968 = vmul.f32 %v1960, %v1913
  %v1969 = vmul.f32 %v1961, %v1917
  %v1970 = vmul.f32 %v1962, %v1921
  %v1971 = vmul.f32 %v1963, %v1963
  %v1972 = vmul.f32 %v1964, %v1964
  %v1973 = vmul.f32 %v1965, %v1965
  %v1974 = vmul.f32 %v1966, %v1966
  %v1975 = vmul.f32 %v1967, %v1967
  %v1976 = vmul.f32 %v1968, %v1968
  %v1977 = vmul.f32 %v1969, %v1969
  %v1978 = vmul.f32 %v1970, %v1970
  %v1979 = vsel %vm1934, %v1971, 0.0
  %v1980 = vsel %vm1934, %v1972, 0.0
  %v1981 = vadd.f32 %v1979, %v1980
  %v1982 = vsel %vm1934, %v1973, 0.0
  %v1983 = vadd.f32 %v1981, %v1982
  %v1984 = vsel %vm1934, %v1974, 0.0
  %v1985 = vadd.f32 %v1983, %v1984
  %1986 = vadd.xlane.f32.xlu0 %v1985
  %v1987 = vpop.xlane.xlu0 %1986
  %v1988 = vsel %vm854, %v1975, 0.0
  %v1989 = vsel %vm854, %v1976, 0.0
  %v1990 = vadd.f32 %v1988, %v1989
  %v1991 = vsel %vm854, %v1977, 0.0
  %v1992 = vadd.f32 %v1990, %v1991
  %v1993 = vsel %vm854, %v1978, 0.0
  %v1994 = vadd.f32 %v1992, %v1993
  %1995 = vadd.xlane.f32.xlu0 %v1994
  %v1996 = vpop.xlane.xlu0 %1995
  %v1997 = vmul.f32 %v1987, 0.0025510204
  %v1998 = vmul.f32 %v1996, 0.0025510204
  %v1999 = vadd.f32 %v1997, 1e-05
  %v2000 = vadd.f32 %v1998, 1e-05
  %v2001 = vrsqrt.pop %v1999
  %v2002 = vrsqrt.pop %v2000
  %v2003 = vmul.f32 %v23, %v2001
  %v2004 = vmul.f32 %v24, %v2002
  %v2005 = vmul.f32 %v1953, %v2003
  %v2006 = vmul.f32 %v1954, %v2004
  %2009 = vrot.lane.b32.xlu0 %v2005, 1
  %v2010 = vpop.permute.xlu0 %2009
  %2011 = vrot.lane.b32.xlu0 %v2006, 1
  %v2012 = vpop.permute.xlu0 %2011
  %v2015 = vsub.f32 %v23, %v2010
  %v2016 = vsub.f32 %v24, %v2012
  %2018 = vset.pattern.permute.xlu0 16
  %2019 = vperm.xlu0 %2018, %v2003
  %v2020 = vpop.permute.xlu0 %2019
  %2023 = vset.pattern.permute.xlu0 16
  %2024 = vperm.xlu0 %2023, %v2004
  %v2025 = vpop.permute.xlu0 %2024
  %v2027 = vmul.f32 %v1897, %v2020
  %v2028 = vmul.f32 %v1898, %v2020
  %v2029 = vmul.f32 %v1899, %v2020
  %v2030 = vmul.f32 %v1900, %v2020
  %v2031 = vmul.f32 %v1901, %v2025
  %v2032 = vmul.f32 %v1902, %v2025
  %v2033 = vmul.f32 %v1903, %v2025
  %v2034 = vmul.f32 %v1904, %v2025
  %2036 = vset.pattern.permute.xlu0 17
  %2037 = vperm.xlu0 %2036, %v2015
  %v2038 = vpop.permute.xlu0 %2037
  %2041 = vset.pattern.permute.xlu0 17
  %2042 = vperm.xlu0 %2041, %v2016
  %v2043 = vpop.permute.xlu0 %2042
  %v2045 = vadd.f32 %v2027, %v2038
  %v2046 = vadd.f32 %v2028, %v2038
  %v2047 = vadd.f32 %v2029, %v2038
  %v2048 = vadd.f32 %v2030, %v2038
  %v2049 = vadd.f32 %v2031, %v2043
  %v2050 = vadd.f32 %v2032, %v2043
  %v2051 = vadd.f32 %v2033, %v2043
  %v2052 = vadd.f32 %v2034, %v2043
  %v2053 = vmax.f32 %v2045, 0.0
  %v2054 = vmax.f32 %v2046, 0.0
  %v2055 = vmax.f32 %v2047, 0.0
  %v2056 = vmax.f32 %v2048, 0.0
  %v2057 = vmax.f32 %v2049, 0.0
  %v2058 = vmax.f32 %v2050, 0.0
  %v2059 = vmax.f32 %v2051, 0.0
  %v2060 = vmax.f32 %v2052, 0.0
  %v2065 = vrot.slane %v2053, 4
  %v2066 = vrot.slane %v2057, 4
  %v2067 = vsel %vm854, %v2065, %v2066
  %v2068 = vrot.slane %v2054, 4
  %v2069 = vrot.slane %v2058, 4
  %v2070 = vsel %vm854, %v2068, %v2069
  %2073 = vst [vmem:[%s3] sm:$0xff] %v2067
  %2074 = vst [vmem:[%s3 + $0x8] sm:$0xff] %v2070
  %v2079 = vrot.slane %v2055, 4
  %v2080 = vrot.slane %v2059, 4
  %v2081 = vsel %vm854, %v2079, %v2080
  %v2082 = vrot.slane %v2056, 4
  %v2083 = vrot.slane %v2060, 4
  %v2084 = vsel %vm854, %v2082, %v2083
  %s2087 = scalar_lea.vmem %s3, 16
  %2088 = vst [vmem:[%s2087] sm:$0xff] %v2081
  %2089 = vst [vmem:[%s2087 + $0x8] sm:$0xff] %v2084
  // Predicated region
  $region14: #{final_block_forward.1} parent=0 // pred_check
    _
  $region15: #{final_block_forward.1} parent=0 // pred_check_branch
    %2091 = sbr.rel (0) target = $region17
  $region16: #{final_block_forward.1} parent=0 // pred_region
    _
  $region17: #{final_block_forward.1} parent=0 // pred_fallthru
    _
  // Predicated region
  $region18: #{final_block_forward.1} parent=0 // pred_check
    _
  $region19: #{final_block_forward.1} parent=0 // pred_check_branch
    %2093 = sbr.rel (0) target = $region21
  $region20: #{final_block_forward.1} parent=0 // pred_region
    _
  $region21: #{final_block_forward.1} parent=0 // pred_fallthru
    _

</llo_original>
